<compile_context>
chip_gen: v7x
topology: tpu7x:2x2x1
jax: 0.10.0
libtpu: 0.0.40
codegen_flags: <defaults>
</compile_context>

<pallas_src>
import functools

import jax
import jax.numpy as jnp
from jax.experimental import pallas as pl
from jax.experimental.pallas import tpu as pltpu

# Layer sizes from the PyTorch module.
D_IN, D_H1, D_H2, D_H3, D_OUT = 36, 512, 256, 128, 36
D_IN_PAD = 128    # lane-dense K for layer 1 (zero-padded input columns)
D_OUT_PAD = 128   # lane-dense output slab (sliced back to 36 in the wrapper)


def generator_kernel(x_ref,
                     w1_ref, b1_ref,
                     w2_ref, b2_ref,
                     w3_ref, b3_ref,
                     w4_ref, b4_ref,
                     o_ref):
    """Fused 4-layer MLP (ReLU x3 + Tanh) on one batch tile.

    Matmuls: bf16 operands, f32 MXU accumulation.
    Epilogues (bias / ReLU / tanh): f32 on the VPU/EUP.
    """
    x = x_ref[...]                                               # (TB, 128) bf16

    h = jnp.dot(x, w1_ref[...], preferred_element_type=jnp.float32)
    h = jnp.maximum(h + b1_ref[...], 0.0)                        # (TB, 512) f32

    h = jnp.dot(h.astype(jnp.bfloat16), w2_ref[...],
                preferred_element_type=jnp.float32)
    h = jnp.maximum(h + b2_ref[...], 0.0)                        # (TB, 256) f32

    h = jnp.dot(h.astype(jnp.bfloat16), w3_ref[...],
                preferred_element_type=jnp.float32)
    h = jnp.maximum(h + b3_ref[...], 0.0)                        # (TB, 128) f32

    h = jnp.dot(h.astype(jnp.bfloat16), w4_ref[...],
                preferred_element_type=jnp.float32)
    o_ref[...] = jnp.tanh(h + b4_ref[...])                       # (TB, 128) f32


@functools.partial(jax.jit, static_argnames=("block_b",))
def generator_forward(x, params, block_b=256):
    """x: [B, 36] float32; params: dict of [in, out] weights and (1, out) biases."""
    B = x.shape[0]

    # Pick the batch tile: start at block_b, halve (down to 128) while the
    # grid would only have a single step.  Keeps >=2 grid iterations for
    # larger batches (v7x has 2 TensorCores) and avoids wasteful padding for
    # small batches.
    eff_block = block_b
    while eff_block > 128 and (B + eff_block - 1) // eff_block < 2:
        eff_block //= 2
    b_pad = ((B + eff_block - 1) // eff_block) * eff_block

    # --- Lane-dense padding + bf16 casts for the MXU operands -------------
    x_pad = jnp.pad(x.astype(jnp.float32),
                    ((0, b_pad - B), (0, D_IN_PAD - D_IN))).astype(jnp.bfloat16)

    w1 = jnp.pad(params["w1"], ((0, D_IN_PAD - D_IN), (0, 0))).astype(jnp.bfloat16)
    b1 = params["b1"].astype(jnp.float32)                      # (1, 512)
    w2 = params["w2"].astype(jnp.bfloat16)                     # (512, 256)
    b2 = params["b2"].astype(jnp.float32)
    w3 = params["w3"].astype(jnp.bfloat16)                     # (256, 128)
    b3 = params["b3"].astype(jnp.float32)
    w4 = jnp.pad(params["w4"],
                 ((0, 0), (0, D_OUT_PAD - D_OUT))).astype(jnp.bfloat16)
    b4 = jnp.pad(params["b4"],
                 ((0, 0), (0, D_OUT_PAD - D_OUT))).astype(jnp.float32)

    grid = (b_pad // eff_block,)

    def const_spec(shape):
        # Block index never changes across the grid, so the weights/biases
        # stay resident in VMEM (no re-DMA per batch tile).
        return pl.BlockSpec(shape, lambda i: (0, 0))

    out_pad = pl.pallas_call(
        generator_kernel,
        out_shape=jax.ShapeDtypeStruct((b_pad, D_OUT_PAD), jnp.float32),
        grid_spec=pltpu.PrefetchScalarGridSpec(
            num_scalar_prefetch=0,
            grid=grid,
            in_specs=[
                pl.BlockSpec((eff_block, D_IN_PAD), lambda i: (i, 0)),  # x tile
                const_spec(w1.shape), const_spec(b1.shape),
                const_spec(w2.shape), const_spec(b2.shape),
                const_spec(w3.shape), const_spec(b3.shape),
                const_spec(w4.shape), const_spec(b4.shape),
            ],
            out_specs=pl.BlockSpec((eff_block, D_OUT_PAD), lambda i: (i, 0)),
        ),
        compiler_params=pltpu.CompilerParams(
            dimension_semantics=("parallel",),
        ),
    )(x_pad, w1, b1, w2, b2, w3, b3, w4, b4)

    # Drop the padded rows / lanes.
    return out_pad[:B, :D_OUT]


def init_generator_params(key):
    """Deterministic init mimicking nn.Linear default (uniform +-1/sqrt(fan_in)).

    Weights are stored pre-transposed as [in, out] so the kernel computes
    x @ W + b, matching PyTorch's x @ W.T + b.
    """
    dims = [(D_IN, D_H1), (D_H1, D_H2), (D_H2, D_H3), (D_H3, D_OUT)]
    params = {}
    for idx, (fan_in, fan_out) in enumerate(dims, start=1):
        key, kw, kb = jax.random.split(key, 3)
        bound = 1.0 / (fan_in ** 0.5)
        params[f"w{idx}"] = jax.random.uniform(
            kw, (fan_in, fan_out), jnp.float32, -bound, bound)
        params[f"b{idx}"] = jax.random.uniform(
            kb, (1, fan_out), jnp.float32, -bound, bound)
    return params


def generator_reference(x, params, matmul_dtype=jnp.float32):
    """Pure-JAX reference of the same forward pass (optionally bf16 matmuls)."""
    def dense(h, w, b):
        return jnp.dot(h.astype(matmul_dtype), w.astype(matmul_dtype),
                       preferred_element_type=jnp.float32) + b
    h = jnp.maximum(dense(x, params["w1"], params["b1"]), 0.0)
    h = jnp.maximum(dense(h, params["w2"], params["b2"]), 0.0)
    h = jnp.maximum(dense(h, params["w3"], params["b3"]), 0.0)
    return jnp.tanh(dense(h, params["w4"], params["b4"]))


if __name__ == "__main__":
    key = jax.random.PRNGKey(0)
    kp, kx = jax.random.split(key)

    params = init_generator_params(kp)

    B = 64  # small batch; wrapper pads to the tile internally
    x = jax.random.normal(kx, (B, D_IN), dtype=jnp.float32)

    out = generator_forward(x, params)
    out = jax.block_until_ready(out)
    assert out.shape == (B, D_OUT)

    # Match the kernel's numerics (bf16 matmuls, f32 accumulate + epilogue).
    ref_bf16 = generator_reference(x, params, matmul_dtype=jnp.bfloat16)
    assert jnp.allclose(out, ref_bf16, atol=2e-3, rtol=2e-3), \
        "mismatch vs bf16 reference"

    # Sanity check against the full-f32 PyTorch-equivalent forward.
    ref_f32 = generator_reference(x, params, matmul_dtype=jnp.float32)
    assert jnp.allclose(out, ref_f32, atol=5e-2, rtol=5e-2), \
        "mismatch vs f32 reference"

    print("KERNEL_OK")
</pallas_src>

<mosaic_0001>
module attributes {stable_mosaic.version = 11 : i64} {
  func.func @generator_kernel(%arg0: i32, %arg1: memref<128x128xbf16, #tpu.memory_space<vmem>>, %arg2: memref<128x512xbf16, #tpu.memory_space<vmem>>, %arg3: memref<1x512xf32, #tpu.memory_space<vmem>>, %arg4: memref<512x256xbf16, #tpu.memory_space<vmem>>, %arg5: memref<1x256xf32, #tpu.memory_space<vmem>>, %arg6: memref<256x128xbf16, #tpu.memory_space<vmem>>, %arg7: memref<1x128xf32, #tpu.memory_space<vmem>>, %arg8: memref<128x128xbf16, #tpu.memory_space<vmem>>, %arg9: memref<1x128xf32, #tpu.memory_space<vmem>>, %arg10: memref<128x128xf32, #tpu.memory_space<vmem>>) attributes {dimension_semantics = [#tpu.dimension_semantics<parallel>], iteration_bounds = array<i64: 1>, scalar_prefetch = 0 : i64, scratch_operands = 0 : i64, tpu.core_type = #tpu.core_type<tc>, window_params = [{transform_indices = @transform_0, window_bounds = array<i64: 128, 128>}, {pipeline_mode = #tpu.pipeline_mode<synchronous>, transform_indices = @transform_1, window_bounds = array<i64: 128, 512>}, {pipeline_mode = #tpu.pipeline_mode<synchronous>, transform_indices = @transform_2, window_bounds = array<i64: 1, 512>}, {pipeline_mode = #tpu.pipeline_mode<synchronous>, transform_indices = @transform_3, window_bounds = array<i64: 512, 256>}, {pipeline_mode = #tpu.pipeline_mode<synchronous>, transform_indices = @transform_4, window_bounds = array<i64: 1, 256>}, {pipeline_mode = #tpu.pipeline_mode<synchronous>, transform_indices = @transform_5, window_bounds = array<i64: 256, 128>}, {pipeline_mode = #tpu.pipeline_mode<synchronous>, transform_indices = @transform_6, window_bounds = array<i64: 1, 128>}, {pipeline_mode = #tpu.pipeline_mode<synchronous>, transform_indices = @transform_7, window_bounds = array<i64: 128, 128>}, {pipeline_mode = #tpu.pipeline_mode<synchronous>, transform_indices = @transform_8, window_bounds = array<i64: 1, 128>}, {transform_indices = @transform_9, window_bounds = array<i64: 128, 128>}]} {
    %c0 = arith.constant 0 : index
    %c0_0 = arith.constant 0 : index
    %0 = vector.load %arg1[%c0, %c0_0] : memref<128x128xbf16, #tpu.memory_space<vmem>>, vector<128x128xbf16>
    %c0_1 = arith.constant 0 : index
    %c0_2 = arith.constant 0 : index
    %1 = vector.load %arg2[%c0_1, %c0_2] : memref<128x512xbf16, #tpu.memory_space<vmem>>, vector<128x512xbf16>
    %cst = arith.constant dense<0.000000e+00> : vector<128x512xf32>
    %2 = tpu.matmul %0, %1, %cst {dimension_numbers = #tpu.dot_dimension_numbers<[1], [0], [0], [1], [0, 0, 1, 1], [], []>} : vector<128x128xbf16>, vector<128x512xbf16>, vector<128x512xf32> -> vector<128x512xf32>
    %c0_3 = arith.constant 0 : index
    %c0_4 = arith.constant 0 : index
    %3 = vector.load %arg3[%c0_3, %c0_4] : memref<1x512xf32, #tpu.memory_space<vmem>>, vector<1x512xf32>
    %4 = vector.broadcast %3 : vector<1x512xf32> to vector<128x512xf32>
    %5 = arith.addf %2, %4 : vector<128x512xf32>
    %cst_5 = arith.constant 0.000000e+00 : f32
    %6 = vector.broadcast %cst_5 : f32 to vector<128x512xf32>
    %7 = arith.maximumf %5, %6 : vector<128x512xf32>
    %8 = arith.truncf %7 : vector<128x512xf32> to vector<128x512xbf16>
    %c0_6 = arith.constant 0 : index
    %c0_7 = arith.constant 0 : index
    %9 = vector.load %arg4[%c0_6, %c0_7] : memref<512x256xbf16, #tpu.memory_space<vmem>>, vector<512x256xbf16>
    %cst_8 = arith.constant dense<0.000000e+00> : vector<128x256xf32>
    %10 = tpu.matmul %8, %9, %cst_8 {dimension_numbers = #tpu.dot_dimension_numbers<[1], [0], [0], [1], [0, 0, 1, 1], [], []>} : vector<128x512xbf16>, vector<512x256xbf16>, vector<128x256xf32> -> vector<128x256xf32>
    %c0_9 = arith.constant 0 : index
    %c0_10 = arith.constant 0 : index
    %11 = vector.load %arg5[%c0_9, %c0_10] : memref<1x256xf32, #tpu.memory_space<vmem>>, vector<1x256xf32>
    %12 = vector.broadcast %11 : vector<1x256xf32> to vector<128x256xf32>
    %13 = arith.addf %10, %12 : vector<128x256xf32>
    %cst_11 = arith.constant 0.000000e+00 : f32
    %14 = vector.broadcast %cst_11 : f32 to vector<128x256xf32>
    %15 = arith.maximumf %13, %14 : vector<128x256xf32>
    %16 = arith.truncf %15 : vector<128x256xf32> to vector<128x256xbf16>
    %c0_12 = arith.constant 0 : index
    %c0_13 = arith.constant 0 : index
    %17 = vector.load %arg6[%c0_12, %c0_13] : memref<256x128xbf16, #tpu.memory_space<vmem>>, vector<256x128xbf16>
    %cst_14 = arith.constant dense<0.000000e+00> : vector<128x128xf32>
    %18 = tpu.matmul %16, %17, %cst_14 {dimension_numbers = #tpu.dot_dimension_numbers<[1], [0], [0], [1], [0, 0, 1, 1], [], []>} : vector<128x256xbf16>, vector<256x128xbf16>, vector<128x128xf32> -> vector<128x128xf32>
    %c0_15 = arith.constant 0 : index
    %c0_16 = arith.constant 0 : index
    %19 = vector.load %arg7[%c0_15, %c0_16] : memref<1x128xf32, #tpu.memory_space<vmem>>, vector<1x128xf32>
    %20 = vector.broadcast %19 : vector<1x128xf32> to vector<128x128xf32>
    %21 = arith.addf %18, %20 : vector<128x128xf32>
    %cst_17 = arith.constant 0.000000e+00 : f32
    %22 = vector.broadcast %cst_17 : f32 to vector<128x128xf32>
    %23 = arith.maximumf %21, %22 : vector<128x128xf32>
    %24 = arith.truncf %23 : vector<128x128xf32> to vector<128x128xbf16>
    %c0_18 = arith.constant 0 : index
    %c0_19 = arith.constant 0 : index
    %25 = vector.load %arg8[%c0_18, %c0_19] : memref<128x128xbf16, #tpu.memory_space<vmem>>, vector<128x128xbf16>
    %cst_20 = arith.constant dense<0.000000e+00> : vector<128x128xf32>
    %26 = tpu.matmul %24, %25, %cst_20 {dimension_numbers = #tpu.dot_dimension_numbers<[1], [0], [0], [1], [0, 0, 1, 1], [], []>} : vector<128x128xbf16>, vector<128x128xbf16>, vector<128x128xf32> -> vector<128x128xf32>
    %c0_21 = arith.constant 0 : index
    %c0_22 = arith.constant 0 : index
    %27 = vector.load %arg9[%c0_21, %c0_22] : memref<1x128xf32, #tpu.memory_space<vmem>>, vector<1x128xf32>
    %28 = vector.broadcast %27 : vector<1x128xf32> to vector<128x128xf32>
    %29 = arith.addf %26, %28 : vector<128x128xf32>
    %30 = math.tanh %29 : vector<128x128xf32>
    %c0_23 = arith.constant 0 : index
    %c0_24 = arith.constant 0 : index
    %31 = vector.load %arg10[%c0_23, %c0_24] : memref<128x128xf32, #tpu.memory_space<vmem>>, vector<128x128xf32>
    tpu.vector_store %arg10[%c0_23, %c0_24], %30 {strides = array<i32>} : memref<128x128xf32, #tpu.memory_space<vmem>>, vector<128x128xf32>,
    return
  }
  func.func @transform_0(%arg0: i32) -> (i32, i32) {
    %c0_i32 = arith.constant 0 : i32
    %c0_i32_0 = arith.constant 0 : i32
    return %arg0, %c0_i32 : i32, i32
  }
  func.func @transform_1(%arg0: i32) -> (i32, i32) {
    %c0_i32 = arith.constant 0 : i32
    %c0_i32_0 = arith.constant 0 : i32
    %c0_i32_1 = arith.constant 0 : i32
    return %c0_i32, %c0_i32_0 : i32, i32
  }
  func.func @transform_2(%arg0: i32) -> (i32, i32) {
    %c0_i32 = arith.constant 0 : i32
    %c0_i32_0 = arith.constant 0 : i32
    %c0_i32_1 = arith.constant 0 : i32
    return %c0_i32, %c0_i32_0 : i32, i32
  }
  func.func @transform_3(%arg0: i32) -> (i32, i32) {
    %c0_i32 = arith.constant 0 : i32
    %c0_i32_0 = arith.constant 0 : i32
    %c0_i32_1 = arith.constant 0 : i32
    return %c0_i32, %c0_i32_0 : i32, i32
  }
  func.func @transform_4(%arg0: i32) -> (i32, i32) {
    %c0_i32 = arith.constant 0 : i32
    %c0_i32_0 = arith.constant 0 : i32
    %c0_i32_1 = arith.constant 0 : i32
    return %c0_i32, %c0_i32_0 : i32, i32
  }
  func.func @transform_5(%arg0: i32) -> (i32, i32) {
    %c0_i32 = arith.constant 0 : i32
    %c0_i32_0 = arith.constant 0 : i32
    %c0_i32_1 = arith.constant 0 : i32
    return %c0_i32, %c0_i32_0 : i32, i32
  }
  func.func @transform_6(%arg0: i32) -> (i32, i32) {
    %c0_i32 = arith.constant 0 : i32
    %c0_i32_0 = arith.constant 0 : i32
    %c0_i32_1 = arith.constant 0 : i32
    return %c0_i32, %c0_i32_0 : i32, i32
  }
  func.func @transform_7(%arg0: i32) -> (i32, i32) {
    %c0_i32 = arith.constant 0 : i32
    %c0_i32_0 = arith.constant 0 : i32
    %c0_i32_1 = arith.constant 0 : i32
    return %c0_i32, %c0_i32_0 : i32, i32
  }
  func.func @transform_8(%arg0: i32) -> (i32, i32) {
    %c0_i32 = arith.constant 0 : i32
    %c0_i32_0 = arith.constant 0 : i32
    %c0_i32_1 = arith.constant 0 : i32
    return %c0_i32, %c0_i32_0 : i32, i32
  }
  func.func @transform_9(%arg0: i32) -> (i32, i32) {
    %c0_i32 = arith.constant 0 : i32
    %c0_i32_0 = arith.constant 0 : i32
    return %arg0, %c0_i32 : i32, i32
  }
}

</mosaic_0001>

<llo_original>
// kernel: generator_forward.1
$region0: #{generator_forward.1}
  #allocation0 [shape = 'u32[]', space=smem, size = 0x4, offset = 0x4, fixed_abs, tag = 'smem constant byte address 0x4 - core index']
  #allocation1 [shape = 'u32[144,128]{1,0:T(1,128)}', space=vmem, size = 0x12000, scoped, tag = 'internal scratch']
  %s0 = inlined_call_operand.vmem [shape: bf16[128,128], index: 0, kind: input, shape index: {}]
  %s1 = inlined_call_operand.vmem [shape: bf16[128,512], index: 1, kind: input, shape index: {}]
  %s2 = inlined_call_operand.vmem [shape: f32[1,512], index: 2, kind: input, shape index: {}]
  %s3 = inlined_call_operand.vmem [shape: bf16[512,256], index: 3, kind: input, shape index: {}]
  %s4 = inlined_call_operand.vmem [shape: f32[1,256], index: 4, kind: input, shape index: {}]
  %s5 = inlined_call_operand.vmem [shape: bf16[256,128], index: 5, kind: input, shape index: {}]
  %s6 = inlined_call_operand.vmem [shape: f32[1,128], index: 6, kind: input, shape index: {}]
  %s7 = inlined_call_operand.vmem [shape: bf16[128,128], index: 7, kind: input, shape index: {}]
  %s8 = inlined_call_operand.vmem [shape: f32[1,128], index: 8, kind: input, shape index: {}]
  %s9 = inlined_call_operand.vmem [shape: f32[128,128], index: 9, kind: output, shape index: {}]
  %s10 = sld [smem:[#allocation0]]
  $region46: #{generator_forward.1} parent=0
    _
  %s12 = ssub.s32 1, %s10
  %s13 = scalar_select 0, %s12, %s10
  // Predicated region
  $region2: #{generator_forward.1} parent=0 // pred_check
    _
  $region3: #{generator_forward.1} parent=0 // pred_check_branch
    %15 = sbr.rel (0) target = $region5
  $region4: #{generator_forward.1} parent=0 // pred_region
    _
  $region5: #{generator_forward.1} parent=0 // pred_fallthru
    _
  // Predicated region
  $region6: #{generator_forward.1} parent=0 // pred_check
    _
  $region7: #{generator_forward.1} parent=0 // pred_check_branch
    %17 = sbr.rel (0) target = $region9
  $region8: #{generator_forward.1} parent=0 // pred_region
    _
  $region9: #{generator_forward.1} parent=0 // pred_fallthru
    _
  // Predicated region
  $region10: #{generator_forward.1} parent=0 // pred_check
    _
  $region11: #{generator_forward.1} parent=0 // pred_check_branch
    %19 = sbr.rel (0) target = $region13
  $region12: #{generator_forward.1} parent=0 // pred_region
    _
  $region13: #{generator_forward.1} parent=0 // pred_fallthru
    _
  // Predicated region
  $region14: #{generator_forward.1} parent=0 // pred_check
    _
  $region15: #{generator_forward.1} parent=0 // pred_check_branch
    %21 = sbr.rel (0) target = $region17
  $region16: #{generator_forward.1} parent=0 // pred_region
    _
  $region17: #{generator_forward.1} parent=0 // pred_fallthru
    _
  // Predicated region
  $region18: #{generator_forward.1} parent=0 // pred_check
    _
  $region19: #{generator_forward.1} parent=0 // pred_check_branch
    %23 = sbr.rel (0) target = $region21
  $region20: #{generator_forward.1} parent=0 // pred_region
    _
  $region21: #{generator_forward.1} parent=0 // pred_fallthru
    _
  // Predicated region
  $region22: #{generator_forward.1} parent=0 // pred_check
    _
  $region23: #{generator_forward.1} parent=0 // pred_check_branch
    %25 = sbr.rel (0) target = $region25
  $region24: #{generator_forward.1} parent=0 // pred_region
    _
  $region25: #{generator_forward.1} parent=0 // pred_fallthru
    _
  // Predicated region
  $region26: #{generator_forward.1} parent=0 // pred_check
    _
  $region27: #{generator_forward.1} parent=0 // pred_check_branch
    %27 = sbr.rel (0) target = $region29
  $region28: #{generator_forward.1} parent=0 // pred_region
    _
  $region29: #{generator_forward.1} parent=0 // pred_fallthru
    _
  // Predicated region
  $region30: #{generator_forward.1} parent=0 // pred_check
    _
  $region31: #{generator_forward.1} parent=0 // pred_check_branch
    %29 = sbr.rel (0) target = $region33
  $region32: #{generator_forward.1} parent=0 // pred_region
    _
  $region33: #{generator_forward.1} parent=0 // pred_fallthru
    _
  // Predicated region
  $region34: #{generator_forward.1} parent=0 // pred_check
    _
  $region35: #{generator_forward.1} parent=0 // pred_check_branch
    %31 = sbr.rel (0) target = $region37
  $region36: #{generator_forward.1} parent=0 // pred_region
    _
  $region37: #{generator_forward.1} parent=0 // pred_fallthru
    _
  %v33 = vld [vmem:[%s0] sm:$0xf]
  %v34 = vld [vmem:[%s0 + $0x4] sm:$0xf]
  %v35 = vld [vmem:[%s0 + $0x8] sm:$0xf]
  %v36 = vld [vmem:[%s0 + $0xc] sm:$0xf]
  %v37 = vld [vmem:[%s0 + $0x10] sm:$0xf]
  %v38 = vld [vmem:[%s0 + $0x14] sm:$0xf]
  %v39 = vld [vmem:[%s0 + $0x18] sm:$0xf]
  %v40 = vld [vmem:[%s0 + $0x1c] sm:$0xf]
  %v41 = vld [vmem:[%s0 + $0x20] sm:$0xf]
  %v42 = vld [vmem:[%s0 + $0x24] sm:$0xf]
  %v43 = vld [vmem:[%s0 + $0x28] sm:$0xf]
  %v44 = vld [vmem:[%s0 + $0x2c] sm:$0xf]
  %v45 = vld [vmem:[%s0 + $0x30] sm:$0xf]
  %v46 = vld [vmem:[%s0 + $0x34] sm:$0xf]
  %v47 = vld [vmem:[%s0 + $0x38] sm:$0xf]
  %v48 = vld [vmem:[%s0 + $0x3c] sm:$0xf]
  %v49 = vld [vmem:[%s1] sm:$0xff]
  %v50 = vld [vmem:[%s1 + $0x8] sm:$0xff]
  %v51 = vld [vmem:[%s1 + $0x10] sm:$0xff]
  %v52 = vld [vmem:[%s1 + $0x18] sm:$0xff]
  %v53 = vld [vmem:[%s1 + $0x20] sm:$0xff]
  %v54 = vld [vmem:[%s1 + $0x28] sm:$0xff]
  %v55 = vld [vmem:[%s1 + $0x30] sm:$0xff]
  %v56 = vld [vmem:[%s1 + $0x38] sm:$0xff]
  %v57 = vld [vmem:[%s1 + $0x40] sm:$0xff]
  %v58 = vld [vmem:[%s1 + $0x48] sm:$0xff]
  %v59 = vld [vmem:[%s1 + $0x50] sm:$0xff]
  %v60 = vld [vmem:[%s1 + $0x58] sm:$0xff]
  %v61 = vld [vmem:[%s1 + $0x60] sm:$0xff]
  %v62 = vld [vmem:[%s1 + $0x68] sm:$0xff]
  %v63 = vld [vmem:[%s1 + $0x70] sm:$0xff]
  %v64 = vld [vmem:[%s1 + $0x78] sm:$0xff]
  %v65 = vld [vmem:[%s1 + $0x80] sm:$0xff]
  %v66 = vld [vmem:[%s1 + $0x88] sm:$0xff]
  %v67 = vld [vmem:[%s1 + $0x90] sm:$0xff]
  %v68 = vld [vmem:[%s1 + $0x98] sm:$0xff]
  %v69 = vld [vmem:[%s1 + $0xa0] sm:$0xff]
  %v70 = vld [vmem:[%s1 + $0xa8] sm:$0xff]
  %v71 = vld [vmem:[%s1 + $0xb0] sm:$0xff]
  %v72 = vld [vmem:[%s1 + $0xb8] sm:$0xff]
  %v73 = vld [vmem:[%s1 + $0xc0] sm:$0xff]
  %v74 = vld [vmem:[%s1 + $0xc8] sm:$0xff]
  %v75 = vld [vmem:[%s1 + $0xd0] sm:$0xff]
  %v76 = vld [vmem:[%s1 + $0xd8] sm:$0xff]
  %v77 = vld [vmem:[%s1 + $0xe0] sm:$0xff]
  %v78 = vld [vmem:[%s1 + $0xe8] sm:$0xff]
  %v79 = vld [vmem:[%s1 + $0xf0] sm:$0xff]
  %v80 = vld [vmem:[%s1 + $0xf8] sm:$0xff]
  %v81 = vld [vmem:[%s2] sm:$0xf]
  %v83 = vlaneseq
  %v84 = vshrl.u32 %v83, 7
  %v85 = vsub.s32 0, %v84
  %v86 = vrot.slane %v81, %v85
  %v87 = vlaneseq
  %v88 = vshrl.u32 %v87, 7
  %v89 = vsub.s32 1, %v88
  %v90 = vrot.slane %v81, %v89
  %v91 = vlaneseq
  %v92 = vshrl.u32 %v91, 7
  %v93 = vsub.s32 2, %v92
  %v94 = vrot.slane %v81, %v93
  %v95 = vlaneseq
  %v96 = vshrl.u32 %v95, 7
  %v97 = vsub.s32 3, %v96
  %v98 = vrot.slane %v81, %v97
  %v119 = vunpack.c.l.b16 %v33
  %v120 = vunpack.c.l.b16 %v34
  %v121 = vunpack.c.l.b16 %v35
  %v122 = vunpack.c.l.b16 %v36
  %v123 = vunpack.c.l.b16 %v37
  %v124 = vunpack.c.l.b16 %v38
  %v125 = vunpack.c.l.b16 %v39
  %v126 = vunpack.c.l.b16 %v40
  %v127 = vunpack.c.l.b16 %v41
  %v128 = vunpack.c.l.b16 %v42
  %v129 = vunpack.c.l.b16 %v43
  %v130 = vunpack.c.l.b16 %v44
  %v131 = vunpack.c.l.b16 %v45
  %v132 = vunpack.c.l.b16 %v46
  %v133 = vunpack.c.l.b16 %v47
  %v134 = vunpack.c.l.b16 %v48
  %v135 = vpack.c.b16 %v120, %v119
  %v136 = vpack.c.b16 %v122, %v121
  %v137 = vpack.c.b16 %v124, %v123
  %v138 = vpack.c.b16 %v126, %v125
  %v139 = vpack.c.b16 %v128, %v127
  %v140 = vpack.c.b16 %v130, %v129
  %v141 = vpack.c.b16 %v132, %v131
  %v142 = vpack.c.b16 %v134, %v133
  %v183 = vunpack.c.l.b16 %v49
  %v184 = vunpack.c.h.b16 %v49
  %v185 = vunpack.c.l.b16 %v50
  %v186 = vunpack.c.h.b16 %v50
  %v187 = vunpack.c.l.b16 %v51
  %v188 = vunpack.c.h.b16 %v51
  %v189 = vunpack.c.l.b16 %v52
  %v190 = vunpack.c.h.b16 %v52
  %v191 = vunpack.c.l.b16 %v53
  %v192 = vunpack.c.h.b16 %v53
  %v193 = vunpack.c.l.b16 %v54
  %v194 = vunpack.c.h.b16 %v54
  %v195 = vunpack.c.l.b16 %v55
  %v196 = vunpack.c.h.b16 %v55
  %v197 = vunpack.c.l.b16 %v56
  %v198 = vunpack.c.h.b16 %v56
  %v199 = vunpack.c.l.b16 %v57
  %v200 = vunpack.c.h.b16 %v57
  %v201 = vunpack.c.l.b16 %v58
  %v202 = vunpack.c.h.b16 %v58
  %v203 = vunpack.c.l.b16 %v59
  %v204 = vunpack.c.h.b16 %v59
  %v205 = vunpack.c.l.b16 %v60
  %v206 = vunpack.c.h.b16 %v60
  %v207 = vunpack.c.l.b16 %v61
  %v208 = vunpack.c.h.b16 %v61
  %v209 = vunpack.c.l.b16 %v62
  %v210 = vunpack.c.h.b16 %v62
  %v211 = vunpack.c.l.b16 %v63
  %v212 = vunpack.c.h.b16 %v63
  %v213 = vunpack.c.l.b16 %v64
  %v214 = vunpack.c.h.b16 %v64
  %v215 = vunpack.c.l.b16 %v65
  %v216 = vunpack.c.h.b16 %v65
  %v217 = vunpack.c.l.b16 %v66
  %v218 = vunpack.c.h.b16 %v66
  %v219 = vunpack.c.l.b16 %v67
  %v220 = vunpack.c.h.b16 %v67
  %v221 = vunpack.c.l.b16 %v68
  %v222 = vunpack.c.h.b16 %v68
  %v223 = vunpack.c.l.b16 %v69
  %v224 = vunpack.c.h.b16 %v69
  %v225 = vunpack.c.l.b16 %v70
  %v226 = vunpack.c.h.b16 %v70
  %v227 = vunpack.c.l.b16 %v71
  %v228 = vunpack.c.h.b16 %v71
  %v229 = vunpack.c.l.b16 %v72
  %v230 = vunpack.c.h.b16 %v72
  %v231 = vunpack.c.l.b16 %v73
  %v232 = vunpack.c.h.b16 %v73
  %v233 = vunpack.c.l.b16 %v74
  %v234 = vunpack.c.h.b16 %v74
  %v235 = vunpack.c.l.b16 %v75
  %v236 = vunpack.c.h.b16 %v75
  %v237 = vunpack.c.l.b16 %v76
  %v238 = vunpack.c.h.b16 %v76
  %v239 = vunpack.c.l.b16 %v77
  %v240 = vunpack.c.h.b16 %v77
  %v241 = vunpack.c.l.b16 %v78
  %v242 = vunpack.c.h.b16 %v78
  %v243 = vunpack.c.l.b16 %v79
  %v244 = vunpack.c.h.b16 %v79
  %v245 = vunpack.c.l.b16 %v80
  %v246 = vunpack.c.h.b16 %v80
  %v247 = vpack.c.b16 %v187, %v183
  %v248 = vpack.c.b16 %v188, %v184
  %v249 = vpack.c.b16 %v189, %v185
  %v250 = vpack.c.b16 %v190, %v186
  %v251 = vpack.c.b16 %v195, %v191
  %v252 = vpack.c.b16 %v196, %v192
  %v253 = vpack.c.b16 %v197, %v193
  %v254 = vpack.c.b16 %v198, %v194
  %v255 = vpack.c.b16 %v203, %v199
  %v256 = vpack.c.b16 %v204, %v200
  %v257 = vpack.c.b16 %v205, %v201
  %v258 = vpack.c.b16 %v206, %v202
  %v259 = vpack.c.b16 %v211, %v207
  %v260 = vpack.c.b16 %v212, %v208
  %v261 = vpack.c.b16 %v213, %v209
  %v262 = vpack.c.b16 %v214, %v210
  %v263 = vpack.c.b16 %v219, %v215
  %v264 = vpack.c.b16 %v220, %v216
  %v265 = vpack.c.b16 %v221, %v217
  %v266 = vpack.c.b16 %v222, %v218
  %v267 = vpack.c.b16 %v227, %v223
  %v268 = vpack.c.b16 %v228, %v224
  %v269 = vpack.c.b16 %v229, %v225
  %v270 = vpack.c.b16 %v230, %v226
  %v271 = vpack.c.b16 %v235, %v231
  %v272 = vpack.c.b16 %v236, %v232
  %v273 = vpack.c.b16 %v237, %v233
  %v274 = vpack.c.b16 %v238, %v234
  %v275 = vpack.c.b16 %v243, %v239
  %v276 = vpack.c.b16 %v244, %v240
  %v277 = vpack.c.b16 %v245, %v241
  %v278 = vpack.c.b16 %v246, %v242
  %311 = vmatprep.subr.bf16.mxu0 %v248
  %312 = vmatpush1.bf16.msra.mxu0 %v247
  %313 = vmatprep.subr.bf16.mxu0 %v252
  %314 = vmatpush1.bf16.msra.mxu0 %v251
  %315 = vmatprep.subr.bf16.mxu0 %v256
  %316 = vmatpush1.bf16.msra.mxu0 %v255
  %317 = vmatprep.subr.bf16.mxu0 %v260
  %318 = vmatpush1.bf16.msra.mxu0 %v259
  %319 = vmatprep.subr.bf16.mxu0 %v264
  %320 = vmatpush1.bf16.msra.mxu0 %v263
  %321 = vmatprep.subr.bf16.mxu0 %v268
  %322 = vmatpush1.bf16.msra.mxu0 %v267
  %323 = vmatprep.subr.bf16.mxu0 %v272
  %324 = vmatpush1.bf16.msra.mxu0 %v271
  %325 = vmatprep.subr.bf16.mxu0 %v276
  %326 = vmatpush1.bf16.msra.mxu0 %v275
  %327 = vmatprep.subr.bf16.mxu0 0
  %328 = vmatpush1.bf16.msra.mxu0 0
  %329 = vmatprep.subr.bf16.mxu0 0
  %330 = vmatpush1.bf16.msra.mxu0 0
  %331 = vmatprep.subr.bf16.mxu0 0
  %332 = vmatpush1.bf16.msra.mxu0 0
  %333 = vmatprep.subr.bf16.mxu0 0
  %334 = vmatpush1.bf16.msra.mxu0 0
  %335 = vmatprep.subr.bf16.mxu0 0
  %336 = vmatpush1.bf16.msra.mxu0 0
  %337 = vmatprep.subr.bf16.mxu0 0
  %338 = vmatpush1.bf16.msra.mxu0 0
  %339 = vmatprep.subr.bf16.mxu0 0
  %340 = vmatpush1.bf16.msra.mxu0 0
  %341 = vmatprep.subr.bf16.mxu0 0
  %342 = vmatpush1.bf16.msra.mxu0 0
  %343 = vmatprep.mubr.bf16.mxu0 0
  %344 = vmatmul.mubr.bf16.gmra.mrb[0].mxu0 %v135
  %v345 = vpop.f32.mrb[0].mxu0
  %v346 = vadd.f32 %v86, %v345
  %v347 = vpop.f32.mrb[0].mxu0
  %v348 = vadd.f32 %v90, %v347
  %v349 = vpop.f32.mrb[0].mxu0
  %v350 = vadd.f32 %v86, %v349
  %v351 = vpop.f32.mrb[0].mxu0
  %v352 = vadd.f32 %v90, %v351
  %353 = vmatprep.mubr.bf16.mxu0 0
  %354 = vmatmul.mubr.bf16.gmra.mrb[0].mxu0 %v136
  %v355 = vpop.f32.mrb[0].mxu0
  %v356 = vadd.f32 %v86, %v355
  %v357 = vpop.f32.mrb[0].mxu0
  %v358 = vadd.f32 %v90, %v357
  %v359 = vpop.f32.mrb[0].mxu0
  %v360 = vadd.f32 %v86, %v359
  %v361 = vpop.f32.mrb[0].mxu0
  %v362 = vadd.f32 %v90, %v361
  %363 = vmatprep.mubr.bf16.mxu0 0
  %364 = vmatmul.mubr.bf16.gmra.mrb[0].mxu0 %v137
  %v365 = vpop.f32.mrb[0].mxu0
  %v366 = vadd.f32 %v86, %v365
  %v367 = vpop.f32.mrb[0].mxu0
  %v368 = vadd.f32 %v90, %v367
  %v369 = vpop.f32.mrb[0].mxu0
  %v370 = vadd.f32 %v86, %v369
  %v371 = vpop.f32.mrb[0].mxu0
  %v372 = vadd.f32 %v90, %v371
  %373 = vmatprep.mubr.bf16.mxu0 0
  %374 = vmatmul.mubr.bf16.gmra.mrb[0].mxu0 %v138
  %v375 = vpop.f32.mrb[0].mxu0
  %v376 = vadd.f32 %v86, %v375
  %v377 = vpop.f32.mrb[0].mxu0
  %v378 = vadd.f32 %v90, %v377
  %v379 = vpop.f32.mrb[0].mxu0
  %v380 = vadd.f32 %v86, %v379
  %v381 = vpop.f32.mrb[0].mxu0
  %v382 = vadd.f32 %v90, %v381
  %383 = vmatprep.mubr.bf16.mxu0 0
  %384 = vmatmul.mubr.bf16.gmra.mrb[0].mxu0 %v139
  %v385 = vpop.f32.mrb[0].mxu0
  %v386 = vadd.f32 %v86, %v385
  %v387 = vpop.f32.mrb[0].mxu0
  %v388 = vadd.f32 %v90, %v387
  %v389 = vpop.f32.mrb[0].mxu0
  %v390 = vadd.f32 %v86, %v389
  %v391 = vpop.f32.mrb[0].mxu0
  %v392 = vadd.f32 %v90, %v391
  %393 = vmatprep.mubr.bf16.mxu0 0
  %394 = vmatmul.mubr.bf16.gmra.mrb[0].mxu0 %v140
  %v395 = vpop.f32.mrb[0].mxu0
  %v396 = vadd.f32 %v86, %v395
  %v397 = vpop.f32.mrb[0].mxu0
  %v398 = vadd.f32 %v90, %v397
  %v399 = vpop.f32.mrb[0].mxu0
  %v400 = vadd.f32 %v86, %v399
  %v401 = vpop.f32.mrb[0].mxu0
  %v402 = vadd.f32 %v90, %v401
  %403 = vmatprep.mubr.bf16.mxu0 0
  %404 = vmatmul.mubr.bf16.gmra.mrb[0].mxu0 %v141
  %v405 = vpop.f32.mrb[0].mxu0
  %v406 = vadd.f32 %v86, %v405
  %v407 = vpop.f32.mrb[0].mxu0
  %v408 = vadd.f32 %v90, %v407
  %v409 = vpop.f32.mrb[0].mxu0
  %v410 = vadd.f32 %v86, %v409
  %v411 = vpop.f32.mrb[0].mxu0
  %v412 = vadd.f32 %v90, %v411
  %413 = vmatprep.mubr.bf16.mxu0 0
  %414 = vmatmul.mubr.bf16.gmra.mrb[0].mxu0 %v142
  %v415 = vpop.f32.mrb[0].mxu0
  %v416 = vadd.f32 %v86, %v415
  %v417 = vpop.f32.mrb[0].mxu0
  %v418 = vadd.f32 %v90, %v417
  %v419 = vpop.f32.mrb[0].mxu0
  %v420 = vadd.f32 %v86, %v419
  %v421 = vpop.f32.mrb[0].mxu0
  %v422 = vadd.f32 %v90, %v421
  %423 = vdwg.mxu0
  %424 = vmatprep.subr.bf16.mxu0 %v250
  %425 = vmatpush1.bf16.msra.mxu0 %v249
  %426 = vmatprep.subr.bf16.mxu0 %v254
  %427 = vmatpush1.bf16.msra.mxu0 %v253
  %428 = vmatprep.subr.bf16.mxu0 %v258
  %429 = vmatpush1.bf16.msra.mxu0 %v257
  %430 = vmatprep.subr.bf16.mxu0 %v262
  %431 = vmatpush1.bf16.msra.mxu0 %v261
  %432 = vmatprep.subr.bf16.mxu0 %v266
  %433 = vmatpush1.bf16.msra.mxu0 %v265
  %434 = vmatprep.subr.bf16.mxu0 %v270
  %435 = vmatpush1.bf16.msra.mxu0 %v269
  %436 = vmatprep.subr.bf16.mxu0 %v274
  %437 = vmatpush1.bf16.msra.mxu0 %v273
  %438 = vmatprep.subr.bf16.mxu0 %v278
  %439 = vmatpush1.bf16.msra.mxu0 %v277
  %440 = vmatprep.subr.bf16.mxu0 0
  %441 = vmatpush1.bf16.msra.mxu0 0
  %442 = vmatprep.subr.bf16.mxu0 0
  %443 = vmatpush1.bf16.msra.mxu0 0
  %444 = vmatprep.subr.bf16.mxu0 0
  %445 = vmatpush1.bf16.msra.mxu0 0
  %446 = vmatprep.subr.bf16.mxu0 0
  %447 = vmatpush1.bf16.msra.mxu0 0
  %448 = vmatprep.subr.bf16.mxu0 0
  %449 = vmatpush1.bf16.msra.mxu0 0
  %450 = vmatprep.subr.bf16.mxu0 0
  %451 = vmatpush1.bf16.msra.mxu0 0
  %452 = vmatprep.subr.bf16.mxu0 0
  %453 = vmatpush1.bf16.msra.mxu0 0
  %454 = vmatprep.subr.bf16.mxu0 0
  %455 = vmatpush1.bf16.msra.mxu0 0
  %456 = vmatprep.mubr.bf16.mxu0 0
  %457 = vmatmul.mubr.bf16.gmra.mrb[0].mxu0 %v135
  %v458 = vpop.f32.mrb[0].mxu0
  %v459 = vadd.f32 %v94, %v458
  %v460 = vpop.f32.mrb[0].mxu0
  %v461 = vadd.f32 %v98, %v460
  %v462 = vpop.f32.mrb[0].mxu0
  %v463 = vadd.f32 %v94, %v462
  %v464 = vpop.f32.mrb[0].mxu0
  %v465 = vadd.f32 %v98, %v464
  %466 = vmatprep.mubr.bf16.mxu0 0
  %467 = vmatmul.mubr.bf16.gmra.mrb[0].mxu0 %v136
  %v468 = vpop.f32.mrb[0].mxu0
  %v469 = vadd.f32 %v94, %v468
  %v470 = vpop.f32.mrb[0].mxu0
  %v471 = vadd.f32 %v98, %v470
  %v472 = vpop.f32.mrb[0].mxu0
  %v473 = vadd.f32 %v94, %v472
  %v474 = vpop.f32.mrb[0].mxu0
  %v475 = vadd.f32 %v98, %v474
  %476 = vmatprep.mubr.bf16.mxu0 0
  %477 = vmatmul.mubr.bf16.gmra.mrb[0].mxu0 %v137
  %v478 = vpop.f32.mrb[0].mxu0
  %v479 = vadd.f32 %v94, %v478
  %v480 = vpop.f32.mrb[0].mxu0
  %v481 = vadd.f32 %v98, %v480
  %v482 = vpop.f32.mrb[0].mxu0
  %v483 = vadd.f32 %v94, %v482
  %v484 = vpop.f32.mrb[0].mxu0
  %v485 = vadd.f32 %v98, %v484
  %486 = vmatprep.mubr.bf16.mxu0 0
  %487 = vmatmul.mubr.bf16.gmra.mrb[0].mxu0 %v138
  %v488 = vpop.f32.mrb[0].mxu0
  %v489 = vadd.f32 %v94, %v488
  %v490 = vpop.f32.mrb[0].mxu0
  %v491 = vadd.f32 %v98, %v490
  %v492 = vpop.f32.mrb[0].mxu0
  %v493 = vadd.f32 %v94, %v492
  %v494 = vpop.f32.mrb[0].mxu0
  %v495 = vadd.f32 %v98, %v494
  %496 = vmatprep.mubr.bf16.mxu0 0
  %497 = vmatmul.mubr.bf16.gmra.mrb[0].mxu0 %v139
  %v498 = vpop.f32.mrb[0].mxu0
  %v499 = vadd.f32 %v94, %v498
  %v500 = vpop.f32.mrb[0].mxu0
  %v501 = vadd.f32 %v98, %v500
  %v502 = vpop.f32.mrb[0].mxu0
  %v503 = vadd.f32 %v94, %v502
  %v504 = vpop.f32.mrb[0].mxu0
  %v505 = vadd.f32 %v98, %v504
  %506 = vmatprep.mubr.bf16.mxu0 0
  %507 = vmatmul.mubr.bf16.gmra.mrb[0].mxu0 %v140
  %v508 = vpop.f32.mrb[0].mxu0
  %v509 = vadd.f32 %v94, %v508
  %v510 = vpop.f32.mrb[0].mxu0
  %v511 = vadd.f32 %v98, %v510
  %v512 = vpop.f32.mrb[0].mxu0
  %v513 = vadd.f32 %v94, %v512
  %v514 = vpop.f32.mrb[0].mxu0
  %v515 = vadd.f32 %v98, %v514
  %516 = vmatprep.mubr.bf16.mxu0 0
  %517 = vmatmul.mubr.bf16.gmra.mrb[0].mxu0 %v141
  %v518 = vpop.f32.mrb[0].mxu0
  %v519 = vadd.f32 %v94, %v518
  %v520 = vpop.f32.mrb[0].mxu0
  %v521 = vadd.f32 %v98, %v520
  %v522 = vpop.f32.mrb[0].mxu0
  %v523 = vadd.f32 %v94, %v522
  %v524 = vpop.f32.mrb[0].mxu0
  %v525 = vadd.f32 %v98, %v524
  %526 = vmatprep.mubr.bf16.mxu0 0
  %527 = vmatmul.mubr.bf16.gmra.mrb[0].mxu0 %v142
  %v528 = vpop.f32.mrb[0].mxu0
  %v529 = vadd.f32 %v94, %v528
  %v530 = vpop.f32.mrb[0].mxu0
  %v531 = vadd.f32 %v98, %v530
  %v532 = vpop.f32.mrb[0].mxu0
  %v533 = vadd.f32 %v94, %v532
  %v534 = vpop.f32.mrb[0].mxu0
  %v535 = vadd.f32 %v98, %v534
  %536 = vdwg.mxu0
  %v537 = vmax.f32 %v346, 0.0
  %v538 = vmax.f32 %v348, 0.0
  %v539 = vmax.f32 %v459, 0.0
  %v540 = vmax.f32 %v461, 0.0
  %v541 = vmax.f32 %v350, 0.0
  %v542 = vmax.f32 %v352, 0.0
  %v543 = vmax.f32 %v463, 0.0
  %v544 = vmax.f32 %v465, 0.0
  %v545 = vmax.f32 %v356, 0.0
  %v546 = vmax.f32 %v358, 0.0
  %v547 = vmax.f32 %v469, 0.0
  %v548 = vmax.f32 %v471, 0.0
  %v549 = vmax.f32 %v360, 0.0
  %v550 = vmax.f32 %v362, 0.0
  %v551 = vmax.f32 %v473, 0.0
  %v552 = vmax.f32 %v475, 0.0
  %v553 = vmax.f32 %v366, 0.0
  %v554 = vmax.f32 %v368, 0.0
  %v555 = vmax.f32 %v479, 0.0
  %v556 = vmax.f32 %v481, 0.0
  %v557 = vmax.f32 %v370, 0.0
  %v558 = vmax.f32 %v372, 0.0
  %v559 = vmax.f32 %v483, 0.0
  %v560 = vmax.f32 %v485, 0.0
  %v561 = vmax.f32 %v376, 0.0
  %v562 = vmax.f32 %v378, 0.0
  %v563 = vmax.f32 %v489, 0.0
  %v564 = vmax.f32 %v491, 0.0
  %v565 = vmax.f32 %v380, 0.0
  %v566 = vmax.f32 %v382, 0.0
  %v567 = vmax.f32 %v493, 0.0
  %v568 = vmax.f32 %v495, 0.0
  %v569 = vmax.f32 %v386, 0.0
  %v570 = vmax.f32 %v388, 0.0
  %v571 = vmax.f32 %v499, 0.0
  %v572 = vmax.f32 %v501, 0.0
  %v573 = vmax.f32 %v390, 0.0
  %v574 = vmax.f32 %v392, 0.0
  %v575 = vmax.f32 %v503, 0.0
  %v576 = vmax.f32 %v505, 0.0
  %v577 = vmax.f32 %v396, 0.0
  %v578 = vmax.f32 %v398, 0.0
  %v579 = vmax.f32 %v509, 0.0
  %v580 = vmax.f32 %v511, 0.0
  %v581 = vmax.f32 %v400, 0.0
  %v582 = vmax.f32 %v402, 0.0
  %v583 = vmax.f32 %v513, 0.0
  %v584 = vmax.f32 %v515, 0.0
  %v585 = vmax.f32 %v406, 0.0
  %v586 = vmax.f32 %v408, 0.0
  %v587 = vmax.f32 %v519, 0.0
  %v588 = vmax.f32 %v521, 0.0
  %v589 = vmax.f32 %v410, 0.0
  %v590 = vmax.f32 %v412, 0.0
  %v591 = vmax.f32 %v523, 0.0
  %v592 = vmax.f32 %v525, 0.0
  %v593 = vmax.f32 %v416, 0.0
  %v594 = vmax.f32 %v418, 0.0
  %v595 = vmax.f32 %v529, 0.0
  %v596 = vmax.f32 %v531, 0.0
  %v597 = vmax.f32 %v420, 0.0
  %v598 = vmax.f32 %v422, 0.0
  %v599 = vmax.f32 %v533, 0.0
  %v600 = vmax.f32 %v535, 0.0
  %v601 = vpack.c.bf16 %v541, %v537
  %v602 = vpack.c.bf16 %v542, %v538
  %v603 = vpack.c.bf16 %v543, %v539
  %v604 = vpack.c.bf16 %v544, %v540
  %v605 = vpack.c.bf16 %v549, %v545
  %v606 = vpack.c.bf16 %v550, %v546
  %v607 = vpack.c.bf16 %v551, %v547
  %v608 = vpack.c.bf16 %v552, %v548
  %v609 = vpack.c.bf16 %v557, %v553
  %v610 = vpack.c.bf16 %v558, %v554
  %v611 = vpack.c.bf16 %v559, %v555
  %v612 = vpack.c.bf16 %v560, %v556
  %v613 = vpack.c.bf16 %v565, %v561
  %v614 = vpack.c.bf16 %v566, %v562
  %v615 = vpack.c.bf16 %v567, %v563
  %v616 = vpack.c.bf16 %v568, %v564
  %v617 = vpack.c.bf16 %v573, %v569
  %v618 = vpack.c.bf16 %v574, %v570
  %v619 = vpack.c.bf16 %v575, %v571
  %v620 = vpack.c.bf16 %v576, %v572
  %v621 = vpack.c.bf16 %v581, %v577
  %v622 = vpack.c.bf16 %v582, %v578
  %v623 = vpack.c.bf16 %v583, %v579
  %v624 = vpack.c.bf16 %v584, %v580
  %v625 = vpack.c.bf16 %v589, %v585
  %v626 = vpack.c.bf16 %v590, %v586
  %v627 = vpack.c.bf16 %v591, %v587
  %v628 = vpack.c.bf16 %v592, %v588
  %v629 = vpack.c.bf16 %v597, %v593
  %v630 = vpack.c.bf16 %v598, %v594
  %v631 = vpack.c.bf16 %v599, %v595
  %v632 = vpack.c.bf16 %v600, %v596
  %v633 = vld [vmem:[%s3] sm:$0xff]
  %v634 = vld [vmem:[%s3 + $0x8] sm:$0xff]
  %v635 = vld [vmem:[%s3 + $0x10] sm:$0xff]
  %v636 = vld [vmem:[%s3 + $0x18] sm:$0xff]
  %v637 = vld [vmem:[%s3 + $0x20] sm:$0xff]
  %v638 = vld [vmem:[%s3 + $0x28] sm:$0xff]
  %v639 = vld [vmem:[%s3 + $0x30] sm:$0xff]
  %v640 = vld [vmem:[%s3 + $0x38] sm:$0xff]
  %v641 = vld [vmem:[%s3 + $0x40] sm:$0xff]
  %v642 = vld [vmem:[%s3 + $0x48] sm:$0xff]
  %v643 = vld [vmem:[%s3 + $0x50] sm:$0xff]
  %v644 = vld [vmem:[%s3 + $0x58] sm:$0xff]
  %v645 = vld [vmem:[%s3 + $0x60] sm:$0xff]
  %v646 = vld [vmem:[%s3 + $0x68] sm:$0xff]
  %v647 = vld [vmem:[%s3 + $0x70] sm:$0xff]
  %v648 = vld [vmem:[%s3 + $0x78] sm:$0xff]
  %v649 = vld [vmem:[%s3 + $0x80] sm:$0xff]
  %v650 = vld [vmem:[%s3 + $0x88] sm:$0xff]
  %v651 = vld [vmem:[%s3 + $0x90] sm:$0xff]
  %v652 = vld [vmem:[%s3 + $0x98] sm:$0xff]
  %v653 = vld [vmem:[%s3 + $0xa0] sm:$0xff]
  %v654 = vld [vmem:[%s3 + $0xa8] sm:$0xff]
  %v655 = vld [vmem:[%s3 + $0xb0] sm:$0xff]
  %v656 = vld [vmem:[%s3 + $0xb8] sm:$0xff]
  %v657 = vld [vmem:[%s3 + $0xc0] sm:$0xff]
  %v658 = vld [vmem:[%s3 + $0xc8] sm:$0xff]
  %v659 = vld [vmem:[%s3 + $0xd0] sm:$0xff]
  %v660 = vld [vmem:[%s3 + $0xd8] sm:$0xff]
  %v661 = vld [vmem:[%s3 + $0xe0] sm:$0xff]
  %v662 = vld [vmem:[%s3 + $0xe8] sm:$0xff]
  %v663 = vld [vmem:[%s3 + $0xf0] sm:$0xff]
  %v664 = vld [vmem:[%s3 + $0xf8] sm:$0xff]
  %v665 = vld [vmem:[%s3 + $0x100] sm:$0xff]
  %v666 = vld [vmem:[%s3 + $0x108] sm:$0xff]
  %v667 = vld [vmem:[%s3 + $0x110] sm:$0xff]
  %v668 = vld [vmem:[%s3 + $0x118] sm:$0xff]
  %v669 = vld [vmem:[%s3 + $0x120] sm:$0xff]
  %v670 = vld [vmem:[%s3 + $0x128] sm:$0xff]
  %v671 = vld [vmem:[%s3 + $0x130] sm:$0xff]
  %v672 = vld [vmem:[%s3 + $0x138] sm:$0xff]
  %v673 = vld [vmem:[%s3 + $0x140] sm:$0xff]
  %v674 = vld [vmem:[%s3 + $0x148] sm:$0xff]
  %v675 = vld [vmem:[%s3 + $0x150] sm:$0xff]
  %v676 = vld [vmem:[%s3 + $0x158] sm:$0xff]
  %v677 = vld [vmem:[%s3 + $0x160] sm:$0xff]
  %v678 = vld [vmem:[%s3 + $0x168] sm:$0xff]
  %v679 = vld [vmem:[%s3 + $0x170] sm:$0xff]
  %v680 = vld [vmem:[%s3 + $0x178] sm:$0xff]
  %v681 = vld [vmem:[%s3 + $0x180] sm:$0xff]
  %v682 = vld [vmem:[%s3 + $0x188] sm:$0xff]
  %v683 = vld [vmem:[%s3 + $0x190] sm:$0xff]
  %v684 = vld [vmem:[%s3 + $0x198] sm:$0xff]
  %v685 = vld [vmem:[%s3 + $0x1a0] sm:$0xff]
  %v686 = vld [vmem:[%s3 + $0x1a8] sm:$0xff]
  %v687 = vld [vmem:[%s3 + $0x1b0] sm:$0xff]
  %v688 = vld [vmem:[%s3 + $0x1b8] sm:$0xff]
  %v689 = vld [vmem:[%s3 + $0x1c0] sm:$0xff]
  %v690 = vld [vmem:[%s3 + $0x1c8] sm:$0xff]
  %v691 = vld [vmem:[%s3 + $0x1d0] sm:$0xff]
  %v692 = vld [vmem:[%s3 + $0x1d8] sm:$0xff]
  %v693 = vld [vmem:[%s3 + $0x1e0] sm:$0xff]
  %v694 = vld [vmem:[%s3 + $0x1e8] sm:$0xff]
  %v695 = vld [vmem:[%s3 + $0x1f0] sm:$0xff]
  %v696 = vld [vmem:[%s3 + $0x1f8] sm:$0xff]
  %v697 = vld [vmem:[%s4] sm:$0x3]
  %v699 = vlaneseq
  %v700 = vshrl.u32 %v699, 7
  %v701 = vsub.s32 0, %v700
  %v702 = vrot.slane %v697, %v701
  %v703 = vlaneseq
  %v704 = vshrl.u32 %v703, 7
  %v705 = vsub.s32 1, %v704
  %v706 = vrot.slane %v697, %v705
  %v773 = vunpack.c.l.b16 %v633
  %v774 = vunpack.c.h.b16 %v633
  %v775 = vunpack.c.l.b16 %v634
  %v776 = vunpack.c.h.b16 %v634
  %v777 = vunpack.c.l.b16 %v635
  %v778 = vunpack.c.h.b16 %v635
  %v779 = vunpack.c.l.b16 %v636
  %v780 = vunpack.c.h.b16 %v636
  %v781 = vunpack.c.l.b16 %v637
  %v782 = vunpack.c.h.b16 %v637
  %v783 = vunpack.c.l.b16 %v638
  %v784 = vunpack.c.h.b16 %v638
  %v785 = vunpack.c.l.b16 %v639
  %v786 = vunpack.c.h.b16 %v639
  %v787 = vunpack.c.l.b16 %v640
  %v788 = vunpack.c.h.b16 %v640
  %v789 = vunpack.c.l.b16 %v641
  %v790 = vunpack.c.h.b16 %v641
  %v791 = vunpack.c.l.b16 %v642
  %v792 = vunpack.c.h.b16 %v642
  %v793 = vunpack.c.l.b16 %v643
  %v794 = vunpack.c.h.b16 %v643
  %v795 = vunpack.c.l.b16 %v644
  %v796 = vunpack.c.h.b16 %v644
  %v797 = vunpack.c.l.b16 %v645
  %v798 = vunpack.c.h.b16 %v645
  %v799 = vunpack.c.l.b16 %v646
  %v800 = vunpack.c.h.b16 %v646
  %v801 = vunpack.c.l.b16 %v647
  %v802 = vunpack.c.h.b16 %v647
  %v803 = vunpack.c.l.b16 %v648
  %v804 = vunpack.c.h.b16 %v648
  %v805 = vunpack.c.l.b16 %v649
  %v806 = vunpack.c.h.b16 %v649
  %v807 = vunpack.c.l.b16 %v650
  %v808 = vunpack.c.h.b16 %v650
  %v809 = vunpack.c.l.b16 %v651
  %v810 = vunpack.c.h.b16 %v651
  %v811 = vunpack.c.l.b16 %v652
  %v812 = vunpack.c.h.b16 %v652
  %v813 = vunpack.c.l.b16 %v653
  %v814 = vunpack.c.h.b16 %v653
  %v815 = vunpack.c.l.b16 %v654
  %v816 = vunpack.c.h.b16 %v654
  %v817 = vunpack.c.l.b16 %v655
  %v818 = vunpack.c.h.b16 %v655
  %v819 = vunpack.c.l.b16 %v656
  %v820 = vunpack.c.h.b16 %v656
  %v821 = vunpack.c.l.b16 %v657
  %v822 = vunpack.c.h.b16 %v657
  %v823 = vunpack.c.l.b16 %v658
  %v824 = vunpack.c.h.b16 %v658
  %v825 = vunpack.c.l.b16 %v659
  %v826 = vunpack.c.h.b16 %v659
  %v827 = vunpack.c.l.b16 %v660
  %v828 = vunpack.c.h.b16 %v660
  %v829 = vunpack.c.l.b16 %v661
  %v830 = vunpack.c.h.b16 %v661
  %v831 = vunpack.c.l.b16 %v662
  %v832 = vunpack.c.h.b16 %v662
  %v833 = vunpack.c.l.b16 %v663
  %v834 = vunpack.c.h.b16 %v663
  %v835 = vunpack.c.l.b16 %v664
  %v836 = vunpack.c.h.b16 %v664
  %v837 = vunpack.c.l.b16 %v665
  %v838 = vunpack.c.h.b16 %v665
  %v839 = vunpack.c.l.b16 %v666
  %v840 = vunpack.c.h.b16 %v666
  %v841 = vunpack.c.l.b16 %v667
  %v842 = vunpack.c.h.b16 %v667
  %v843 = vunpack.c.l.b16 %v668
  %v844 = vunpack.c.h.b16 %v668
  %v845 = vunpack.c.l.b16 %v669
  %v846 = vunpack.c.h.b16 %v669
  %v847 = vunpack.c.l.b16 %v670
  %v848 = vunpack.c.h.b16 %v670
  %v849 = vunpack.c.l.b16 %v671
  %v850 = vunpack.c.h.b16 %v671
  %v851 = vunpack.c.l.b16 %v672
  %v852 = vunpack.c.h.b16 %v672
  %v853 = vunpack.c.l.b16 %v673
  %v854 = vunpack.c.h.b16 %v673
  %v855 = vunpack.c.l.b16 %v674
  %v856 = vunpack.c.h.b16 %v674
  %v857 = vunpack.c.l.b16 %v675
  %v858 = vunpack.c.h.b16 %v675
  %v859 = vunpack.c.l.b16 %v676
  %v860 = vunpack.c.h.b16 %v676
  %v861 = vunpack.c.l.b16 %v677
  %v862 = vunpack.c.h.b16 %v677
  %v863 = vunpack.c.l.b16 %v678
  %v864 = vunpack.c.h.b16 %v678
  %v865 = vunpack.c.l.b16 %v679
  %v866 = vunpack.c.h.b16 %v679
  %v867 = vunpack.c.l.b16 %v680
  %v868 = vunpack.c.h.b16 %v680
  %v869 = vunpack.c.l.b16 %v681
  %v870 = vunpack.c.h.b16 %v681
  %v871 = vunpack.c.l.b16 %v682
  %v872 = vunpack.c.h.b16 %v682
  %v873 = vunpack.c.l.b16 %v683
  %v874 = vunpack.c.h.b16 %v683
  %v875 = vunpack.c.l.b16 %v684
  %v876 = vunpack.c.h.b16 %v684
  %v877 = vunpack.c.l.b16 %v685
  %v878 = vunpack.c.h.b16 %v685
  %v879 = vunpack.c.l.b16 %v686
  %v880 = vunpack.c.h.b16 %v686
  %v881 = vunpack.c.l.b16 %v687
  %v882 = vunpack.c.h.b16 %v687
  %v883 = vunpack.c.l.b16 %v688
  %v884 = vunpack.c.h.b16 %v688
  %v885 = vunpack.c.l.b16 %v689
  %v886 = vunpack.c.h.b16 %v689
  %v887 = vunpack.c.l.b16 %v690
  %v888 = vunpack.c.h.b16 %v690
  %v889 = vunpack.c.l.b16 %v691
  %v890 = vunpack.c.h.b16 %v691
  %v891 = vunpack.c.l.b16 %v692
  %v892 = vunpack.c.h.b16 %v692
  %v893 = vunpack.c.l.b16 %v693
  %v894 = vunpack.c.h.b16 %v693
  %v895 = vunpack.c.l.b16 %v694
  %v896 = vunpack.c.h.b16 %v694
  %v897 = vunpack.c.l.b16 %v695
  %v898 = vunpack.c.h.b16 %v695
  %v899 = vunpack.c.l.b16 %v696
  %v900 = vunpack.c.h.b16 %v696
  %v901 = vpack.c.b16 %v775, %v773
  %v902 = vpack.c.b16 %v776, %v774
  %v903 = vpack.c.b16 %v779, %v777
  %v904 = vpack.c.b16 %v780, %v778
  %v905 = vpack.c.b16 %v783, %v781
  %v906 = vpack.c.b16 %v784, %v782
  %v907 = vpack.c.b16 %v787, %v785
  %v908 = vpack.c.b16 %v788, %v786
  %v909 = vpack.c.b16 %v791, %v789
  %v910 = vpack.c.b16 %v792, %v790
  %v911 = vpack.c.b16 %v795, %v793
  %v912 = vpack.c.b16 %v796, %v794
  %v913 = vpack.c.b16 %v799, %v797
  %v914 = vpack.c.b16 %v800, %v798
  %v915 = vpack.c.b16 %v803, %v801
  %v916 = vpack.c.b16 %v804, %v802
  %v917 = vpack.c.b16 %v807, %v805
  %v918 = vpack.c.b16 %v808, %v806
  %v919 = vpack.c.b16 %v811, %v809
  %v920 = vpack.c.b16 %v812, %v810
  %v921 = vpack.c.b16 %v815, %v813
  %v922 = vpack.c.b16 %v816, %v814
  %v923 = vpack.c.b16 %v819, %v817
  %v924 = vpack.c.b16 %v820, %v818
  %v925 = vpack.c.b16 %v823, %v821
  %v926 = vpack.c.b16 %v824, %v822
  %v927 = vpack.c.b16 %v827, %v825
  %v928 = vpack.c.b16 %v828, %v826
  %v929 = vpack.c.b16 %v831, %v829
  %v930 = vpack.c.b16 %v832, %v830
  %v931 = vpack.c.b16 %v835, %v833
  %v932 = vpack.c.b16 %v836, %v834
  %v933 = vpack.c.b16 %v839, %v837
  %v934 = vpack.c.b16 %v840, %v838
  %v935 = vpack.c.b16 %v843, %v841
  %v936 = vpack.c.b16 %v844, %v842
  %v937 = vpack.c.b16 %v847, %v845
  %v938 = vpack.c.b16 %v848, %v846
  %v939 = vpack.c.b16 %v851, %v849
  %v940 = vpack.c.b16 %v852, %v850
  %v941 = vpack.c.b16 %v855, %v853
  %v942 = vpack.c.b16 %v856, %v854
  %v943 = vpack.c.b16 %v859, %v857
  %v944 = vpack.c.b16 %v860, %v858
  %v945 = vpack.c.b16 %v863, %v861
  %v946 = vpack.c.b16 %v864, %v862
  %v947 = vpack.c.b16 %v867, %v865
  %v948 = vpack.c.b16 %v868, %v866
  %v949 = vpack.c.b16 %v871, %v869
  %v950 = vpack.c.b16 %v872, %v870
  %v951 = vpack.c.b16 %v875, %v873
  %v952 = vpack.c.b16 %v876, %v874
  %v953 = vpack.c.b16 %v879, %v877
  %v954 = vpack.c.b16 %v880, %v878
  %v955 = vpack.c.b16 %v883, %v881
  %v956 = vpack.c.b16 %v884, %v882
  %v957 = vpack.c.b16 %v887, %v885
  %v958 = vpack.c.b16 %v888, %v886
  %v959 = vpack.c.b16 %v891, %v889
  %v960 = vpack.c.b16 %v892, %v890
  %v961 = vpack.c.b16 %v895, %v893
  %v962 = vpack.c.b16 %v896, %v894
  %v963 = vpack.c.b16 %v899, %v897
  %v964 = vpack.c.b16 %v900, %v898
  %1029 = vmatprep.subr.bf16.mxu0 %v902
  %1030 = vmatpush1.bf16.msra.mxu0 %v901
  %1031 = vmatprep.subr.bf16.mxu0 %v904
  %1032 = vmatpush1.bf16.msra.mxu0 %v903
  %1033 = vmatprep.subr.bf16.mxu0 %v906
  %1034 = vmatpush1.bf16.msra.mxu0 %v905
  %1035 = vmatprep.subr.bf16.mxu0 %v908
  %1036 = vmatpush1.bf16.msra.mxu0 %v907
  %1037 = vmatprep.subr.bf16.mxu0 %v910
  %1038 = vmatpush1.bf16.msra.mxu0 %v909
  %1039 = vmatprep.subr.bf16.mxu0 %v912
  %1040 = vmatpush1.bf16.msra.mxu0 %v911
  %1041 = vmatprep.subr.bf16.mxu0 %v914
  %1042 = vmatpush1.bf16.msra.mxu0 %v913
  %1043 = vmatprep.subr.bf16.mxu0 %v916
  %1044 = vmatpush1.bf16.msra.mxu0 %v915
  %1045 = vmatprep.subr.bf16.mxu0 %v918
  %1046 = vmatpush1.bf16.msra.mxu0 %v917
  %1047 = vmatprep.subr.bf16.mxu0 %v920
  %1048 = vmatpush1.bf16.msra.mxu0 %v919
  %1049 = vmatprep.subr.bf16.mxu0 %v922
  %1050 = vmatpush1.bf16.msra.mxu0 %v921
  %1051 = vmatprep.subr.bf16.mxu0 %v924
  %1052 = vmatpush1.bf16.msra.mxu0 %v923
  %1053 = vmatprep.subr.bf16.mxu0 %v926
  %1054 = vmatpush1.bf16.msra.mxu0 %v925
  %1055 = vmatprep.subr.bf16.mxu0 %v928
  %1056 = vmatpush1.bf16.msra.mxu0 %v927
  %1057 = vmatprep.subr.bf16.mxu0 %v930
  %1058 = vmatpush1.bf16.msra.mxu0 %v929
  %1059 = vmatprep.subr.bf16.mxu0 %v932
  %1060 = vmatpush1.bf16.msra.mxu0 %v931
  %1061 = vmatprep.mubr.bf16.mxu0 %v602
  %1062 = vmatmul.mubr.bf16.gmra.mrb[0].mxu0 %v601
  %v1063 = vpop.f32.mrb[0].mxu0
  %v1064 = vadd.f32 %v702, %v1063
  %v1065 = vpop.f32.mrb[0].mxu0
  %v1066 = vadd.f32 %v706, %v1065
  %v1067 = vpop.f32.mrb[0].mxu0
  %v1068 = vadd.f32 %v702, %v1067
  %v1069 = vpop.f32.mrb[0].mxu0
  %v1070 = vadd.f32 %v706, %v1069
  %1071 = vmatprep.mubr.bf16.mxu0 %v606
  %1072 = vmatmul.mubr.bf16.gmra.mrb[0].mxu0 %v605
  %v1073 = vpop.f32.mrb[0].mxu0
  %v1074 = vadd.f32 %v702, %v1073
  %v1075 = vpop.f32.mrb[0].mxu0
  %v1076 = vadd.f32 %v706, %v1075
  %v1077 = vpop.f32.mrb[0].mxu0
  %v1078 = vadd.f32 %v702, %v1077
  %v1079 = vpop.f32.mrb[0].mxu0
  %v1080 = vadd.f32 %v706, %v1079
  %1081 = vmatprep.mubr.bf16.mxu0 %v610
  %1082 = vmatmul.mubr.bf16.gmra.mrb[0].mxu0 %v609
  %v1083 = vpop.f32.mrb[0].mxu0
  %v1084 = vadd.f32 %v702, %v1083
  %v1085 = vpop.f32.mrb[0].mxu0
  %v1086 = vadd.f32 %v706, %v1085
  %v1087 = vpop.f32.mrb[0].mxu0
  %v1088 = vadd.f32 %v702, %v1087
  %v1089 = vpop.f32.mrb[0].mxu0
  %v1090 = vadd.f32 %v706, %v1089
  %1091 = vmatprep.mubr.bf16.mxu0 %v614
  %1092 = vmatmul.mubr.bf16.gmra.mrb[0].mxu0 %v613
  %v1093 = vpop.f32.mrb[0].mxu0
  %v1094 = vadd.f32 %v702, %v1093
  %v1095 = vpop.f32.mrb[0].mxu0
  %v1096 = vadd.f32 %v706, %v1095
  %v1097 = vpop.f32.mrb[0].mxu0
  %v1098 = vadd.f32 %v702, %v1097
  %v1099 = vpop.f32.mrb[0].mxu0
  %v1100 = vadd.f32 %v706, %v1099
  %1101 = vmatprep.mubr.bf16.mxu0 %v618
  %1102 = vmatmul.mubr.bf16.gmra.mrb[0].mxu0 %v617
  %v1103 = vpop.f32.mrb[0].mxu0
  %v1104 = vadd.f32 %v702, %v1103
  %v1105 = vpop.f32.mrb[0].mxu0
  %v1106 = vadd.f32 %v706, %v1105
  %v1107 = vpop.f32.mrb[0].mxu0
  %v1108 = vadd.f32 %v702, %v1107
  %v1109 = vpop.f32.mrb[0].mxu0
  %v1110 = vadd.f32 %v706, %v1109
  %1111 = vmatprep.mubr.bf16.mxu0 %v622
  %1112 = vmatmul.mubr.bf16.gmra.mrb[0].mxu0 %v621
  %v1113 = vpop.f32.mrb[0].mxu0
  %v1114 = vadd.f32 %v702, %v1113
  %v1115 = vpop.f32.mrb[0].mxu0
  %v1116 = vadd.f32 %v706, %v1115
  %v1117 = vpop.f32.mrb[0].mxu0
  %v1118 = vadd.f32 %v702, %v1117
  %v1119 = vpop.f32.mrb[0].mxu0
  %v1120 = vadd.f32 %v706, %v1119
  %1121 = vmatprep.mubr.bf16.mxu0 %v626
  %1122 = vmatmul.mubr.bf16.gmra.mrb[0].mxu0 %v625
  %v1123 = vpop.f32.mrb[0].mxu0
  %v1124 = vadd.f32 %v702, %v1123
  %v1125 = vpop.f32.mrb[0].mxu0
  %v1126 = vadd.f32 %v706, %v1125
  %v1127 = vpop.f32.mrb[0].mxu0
  %v1128 = vadd.f32 %v702, %v1127
  %v1129 = vpop.f32.mrb[0].mxu0
  %v1130 = vadd.f32 %v706, %v1129
  %1131 = vmatprep.mubr.bf16.mxu0 %v630
  %1132 = vmatmul.mubr.bf16.gmra.mrb[0].mxu0 %v629
  %v1133 = vpop.f32.mrb[0].mxu0
  %v1134 = vadd.f32 %v702, %v1133
  %v1135 = vpop.f32.mrb[0].mxu0
  %v1136 = vadd.f32 %v706, %v1135
  %v1137 = vpop.f32.mrb[0].mxu0
  %v1138 = vadd.f32 %v702, %v1137
  %v1139 = vpop.f32.mrb[0].mxu0
  %v1140 = vadd.f32 %v706, %v1139
  %1141 = vdwg.mxu0
  %1142 = vmatprep.subr.bf16.mxu0 %v934
  %1143 = vmatpush1.bf16.msra.mxu0 %v933
  %1144 = vmatprep.subr.bf16.mxu0 %v936
  %1145 = vmatpush1.bf16.msra.mxu0 %v935
  %1146 = vmatprep.subr.bf16.mxu0 %v938
  %1147 = vmatpush1.bf16.msra.mxu0 %v937
  %1148 = vmatprep.subr.bf16.mxu0 %v940
  %1149 = vmatpush1.bf16.msra.mxu0 %v939
  %1150 = vmatprep.subr.bf16.mxu0 %v942
  %1151 = vmatpush1.bf16.msra.mxu0 %v941
  %1152 = vmatprep.subr.bf16.mxu0 %v944
  %1153 = vmatpush1.bf16.msra.mxu0 %v943
  %1154 = vmatprep.subr.bf16.mxu0 %v946
  %1155 = vmatpush1.bf16.msra.mxu0 %v945
  %1156 = vmatprep.subr.bf16.mxu0 %v948
  %1157 = vmatpush1.bf16.msra.mxu0 %v947
  %1158 = vmatprep.subr.bf16.mxu0 %v950
  %1159 = vmatpush1.bf16.msra.mxu0 %v949
  %1160 = vmatprep.subr.bf16.mxu0 %v952
  %1161 = vmatpush1.bf16.msra.mxu0 %v951
  %1162 = vmatprep.subr.bf16.mxu0 %v954
  %1163 = vmatpush1.bf16.msra.mxu0 %v953
  %1164 = vmatprep.subr.bf16.mxu0 %v956
  %1165 = vmatpush1.bf16.msra.mxu0 %v955
  %1166 = vmatprep.subr.bf16.mxu0 %v958
  %1167 = vmatpush1.bf16.msra.mxu0 %v957
  %1168 = vmatprep.subr.bf16.mxu0 %v960
  %1169 = vmatpush1.bf16.msra.mxu0 %v959
  %1170 = vmatprep.subr.bf16.mxu0 %v962
  %1171 = vmatpush1.bf16.msra.mxu0 %v961
  %1172 = vmatprep.subr.bf16.mxu0 %v964
  %1173 = vmatpush1.bf16.msra.mxu0 %v963
  %1174 = vmatprep.mubr.bf16.mxu0 %v604
  %1175 = vmatmul.mubr.bf16.gmra.mrb[0].mxu0 %v603
  %v1176 = vpop.f32.mrb[0].mxu0
  %v1177 = vadd.f32 %v1064, %v1176
  %v1178 = vpop.f32.mrb[0].mxu0
  %v1179 = vadd.f32 %v1066, %v1178
  %v1180 = vpop.f32.mrb[0].mxu0
  %v1181 = vadd.f32 %v1068, %v1180
  %v1182 = vpop.f32.mrb[0].mxu0
  %v1183 = vadd.f32 %v1070, %v1182
  %1184 = vmatprep.mubr.bf16.mxu0 %v608
  %1185 = vmatmul.mubr.bf16.gmra.mrb[0].mxu0 %v607
  %v1186 = vpop.f32.mrb[0].mxu0
  %v1187 = vadd.f32 %v1074, %v1186
  %v1188 = vpop.f32.mrb[0].mxu0
  %v1189 = vadd.f32 %v1076, %v1188
  %v1190 = vpop.f32.mrb[0].mxu0
  %v1191 = vadd.f32 %v1078, %v1190
  %v1192 = vpop.f32.mrb[0].mxu0
  %v1193 = vadd.f32 %v1080, %v1192
  %1194 = vmatprep.mubr.bf16.mxu0 %v612
  %1195 = vmatmul.mubr.bf16.gmra.mrb[0].mxu0 %v611
  %v1196 = vpop.f32.mrb[0].mxu0
  %v1197 = vadd.f32 %v1084, %v1196
  %v1198 = vpop.f32.mrb[0].mxu0
  %v1199 = vadd.f32 %v1086, %v1198
  %v1200 = vpop.f32.mrb[0].mxu0
  %v1201 = vadd.f32 %v1088, %v1200
  %v1202 = vpop.f32.mrb[0].mxu0
  %v1203 = vadd.f32 %v1090, %v1202
  %1204 = vmatprep.mubr.bf16.mxu0 %v616
  %1205 = vmatmul.mubr.bf16.gmra.mrb[0].mxu0 %v615
  %v1206 = vpop.f32.mrb[0].mxu0
  %v1207 = vadd.f32 %v1094, %v1206
  %v1208 = vpop.f32.mrb[0].mxu0
  %v1209 = vadd.f32 %v1096, %v1208
  %v1210 = vpop.f32.mrb[0].mxu0
  %v1211 = vadd.f32 %v1098, %v1210
  %v1212 = vpop.f32.mrb[0].mxu0
  %v1213 = vadd.f32 %v1100, %v1212
  %1214 = vmatprep.mubr.bf16.mxu0 %v620
  %1215 = vmatmul.mubr.bf16.gmra.mrb[0].mxu0 %v619
  %v1216 = vpop.f32.mrb[0].mxu0
  %v1217 = vadd.f32 %v1104, %v1216
  %v1218 = vpop.f32.mrb[0].mxu0
  %v1219 = vadd.f32 %v1106, %v1218
  %v1220 = vpop.f32.mrb[0].mxu0
  %v1221 = vadd.f32 %v1108, %v1220
  %v1222 = vpop.f32.mrb[0].mxu0
  %v1223 = vadd.f32 %v1110, %v1222
  %1224 = vmatprep.mubr.bf16.mxu0 %v624
  %1225 = vmatmul.mubr.bf16.gmra.mrb[0].mxu0 %v623
  %v1226 = vpop.f32.mrb[0].mxu0
  %v1227 = vadd.f32 %v1114, %v1226
  %v1228 = vpop.f32.mrb[0].mxu0
  %v1229 = vadd.f32 %v1116, %v1228
  %v1230 = vpop.f32.mrb[0].mxu0
  %v1231 = vadd.f32 %v1118, %v1230
  %v1232 = vpop.f32.mrb[0].mxu0
  %v1233 = vadd.f32 %v1120, %v1232
  %1234 = vmatprep.mubr.bf16.mxu0 %v628
  %1235 = vmatmul.mubr.bf16.gmra.mrb[0].mxu0 %v627
  %v1236 = vpop.f32.mrb[0].mxu0
  %v1237 = vadd.f32 %v1124, %v1236
  %v1238 = vpop.f32.mrb[0].mxu0
  %v1239 = vadd.f32 %v1126, %v1238
  %v1240 = vpop.f32.mrb[0].mxu0
  %v1241 = vadd.f32 %v1128, %v1240
  %v1242 = vpop.f32.mrb[0].mxu0
  %v1243 = vadd.f32 %v1130, %v1242
  %1244 = vmatprep.mubr.bf16.mxu0 %v632
  %1245 = vmatmul.mubr.bf16.gmra.mrb[0].mxu0 %v631
  %v1246 = vpop.f32.mrb[0].mxu0
  %v1247 = vadd.f32 %v1134, %v1246
  %v1248 = vpop.f32.mrb[0].mxu0
  %v1249 = vadd.f32 %v1136, %v1248
  %v1250 = vpop.f32.mrb[0].mxu0
  %v1251 = vadd.f32 %v1138, %v1250
  %v1252 = vpop.f32.mrb[0].mxu0
  %v1253 = vadd.f32 %v1140, %v1252
  %1254 = vdwg.mxu0
  %v1255 = vmax.f32 %v1177, 0.0
  %v1256 = vmax.f32 %v1179, 0.0
  %v1257 = vmax.f32 %v1181, 0.0
  %v1258 = vmax.f32 %v1183, 0.0
  %v1259 = vmax.f32 %v1187, 0.0
  %v1260 = vmax.f32 %v1189, 0.0
  %v1261 = vmax.f32 %v1191, 0.0
  %v1262 = vmax.f32 %v1193, 0.0
  %v1263 = vmax.f32 %v1197, 0.0
  %v1264 = vmax.f32 %v1199, 0.0
  %v1265 = vmax.f32 %v1201, 0.0
  %v1266 = vmax.f32 %v1203, 0.0
  %v1267 = vmax.f32 %v1207, 0.0
  %v1268 = vmax.f32 %v1209, 0.0
  %v1269 = vmax.f32 %v1211, 0.0
  %v1270 = vmax.f32 %v1213, 0.0
  %v1271 = vmax.f32 %v1217, 0.0
  %v1272 = vmax.f32 %v1219, 0.0
  %v1273 = vmax.f32 %v1221, 0.0
  %v1274 = vmax.f32 %v1223, 0.0
  %v1275 = vmax.f32 %v1227, 0.0
  %v1276 = vmax.f32 %v1229, 0.0
  %v1277 = vmax.f32 %v1231, 0.0
  %v1278 = vmax.f32 %v1233, 0.0
  %v1279 = vmax.f32 %v1237, 0.0
  %v1280 = vmax.f32 %v1239, 0.0
  %v1281 = vmax.f32 %v1241, 0.0
  %v1282 = vmax.f32 %v1243, 0.0
  %v1283 = vmax.f32 %v1247, 0.0
  %v1284 = vmax.f32 %v1249, 0.0
  %v1285 = vmax.f32 %v1251, 0.0
  %v1286 = vmax.f32 %v1253, 0.0
  %v1287 = vpack.c.bf16 %v1257, %v1255
  %v1288 = vpack.c.bf16 %v1258, %v1256
  %v1289 = vpack.c.bf16 %v1261, %v1259
  %v1290 = vpack.c.bf16 %v1262, %v1260
  %v1291 = vpack.c.bf16 %v1265, %v1263
  %v1292 = vpack.c.bf16 %v1266, %v1264
  %v1293 = vpack.c.bf16 %v1269, %v1267
  %v1294 = vpack.c.bf16 %v1270, %v1268
  %v1295 = vpack.c.bf16 %v1273, %v1271
  %v1296 = vpack.c.bf16 %v1274, %v1272
  %v1297 = vpack.c.bf16 %v1277, %v1275
  %v1298 = vpack.c.bf16 %v1278, %v1276
  %v1299 = vpack.c.bf16 %v1281, %v1279
  %v1300 = vpack.c.bf16 %v1282, %v1280
  %v1301 = vpack.c.bf16 %v1285, %v1283
  %v1302 = vpack.c.bf16 %v1286, %v1284
  %v1303 = vld [vmem:[%s5] sm:$0xf]
  %v1304 = vld [vmem:[%s5 + $0x4] sm:$0xf]
  %v1305 = vld [vmem:[%s5 + $0x8] sm:$0xf]
  %v1306 = vld [vmem:[%s5 + $0xc] sm:$0xf]
  %v1307 = vld [vmem:[%s5 + $0x10] sm:$0xf]
  %v1308 = vld [vmem:[%s5 + $0x14] sm:$0xf]
  %v1309 = vld [vmem:[%s5 + $0x18] sm:$0xf]
  %v1310 = vld [vmem:[%s5 + $0x1c] sm:$0xf]
  %v1311 = vld [vmem:[%s5 + $0x20] sm:$0xf]
  %v1312 = vld [vmem:[%s5 + $0x24] sm:$0xf]
  %v1313 = vld [vmem:[%s5 + $0x28] sm:$0xf]
  %v1314 = vld [vmem:[%s5 + $0x2c] sm:$0xf]
  %v1315 = vld [vmem:[%s5 + $0x30] sm:$0xf]
  %v1316 = vld [vmem:[%s5 + $0x34] sm:$0xf]
  %v1317 = vld [vmem:[%s5 + $0x38] sm:$0xf]
  %v1318 = vld [vmem:[%s5 + $0x3c] sm:$0xf]
  %v1319 = vld [vmem:[%s5 + $0x40] sm:$0xf]
  %v1320 = vld [vmem:[%s5 + $0x44] sm:$0xf]
  %v1321 = vld [vmem:[%s5 + $0x48] sm:$0xf]
  %v1322 = vld [vmem:[%s5 + $0x4c] sm:$0xf]
  %v1323 = vld [vmem:[%s5 + $0x50] sm:$0xf]
  %v1324 = vld [vmem:[%s5 + $0x54] sm:$0xf]
  %v1325 = vld [vmem:[%s5 + $0x58] sm:$0xf]
  %v1326 = vld [vmem:[%s5 + $0x5c] sm:$0xf]
  %v1327 = vld [vmem:[%s5 + $0x60] sm:$0xf]
  %v1328 = vld [vmem:[%s5 + $0x64] sm:$0xf]
  %v1329 = vld [vmem:[%s5 + $0x68] sm:$0xf]
  %v1330 = vld [vmem:[%s5 + $0x6c] sm:$0xf]
  %v1331 = vld [vmem:[%s5 + $0x70] sm:$0xf]
  %v1332 = vld [vmem:[%s5 + $0x74] sm:$0xf]
  %v1333 = vld [vmem:[%s5 + $0x78] sm:$0xf]
  %v1334 = vld [vmem:[%s5 + $0x7c] sm:$0xf]
  %v1335 = vld [vmem:[%s6] sm:$0x1]
  %v1337 = vlaneseq
  %v1338 = vshrl.u32 %v1337, 7
  %v1339 = vsub.s32 0, %v1338
  %v1340 = vrot.slane %v1335, %v1339
  %v1374 = vunpack.c.l.b16 %v1303
  %v1375 = vunpack.c.l.b16 %v1304
  %v1376 = vunpack.c.l.b16 %v1305
  %v1377 = vunpack.c.l.b16 %v1306
  %v1378 = vunpack.c.l.b16 %v1307
  %v1379 = vunpack.c.l.b16 %v1308
  %v1380 = vunpack.c.l.b16 %v1309
  %v1381 = vunpack.c.l.b16 %v1310
  %v1382 = vunpack.c.l.b16 %v1311
  %v1383 = vunpack.c.l.b16 %v1312
  %v1384 = vunpack.c.l.b16 %v1313
  %v1385 = vunpack.c.l.b16 %v1314
  %v1386 = vunpack.c.l.b16 %v1315
  %v1387 = vunpack.c.l.b16 %v1316
  %v1388 = vunpack.c.l.b16 %v1317
  %v1389 = vunpack.c.l.b16 %v1318
  %v1390 = vunpack.c.l.b16 %v1319
  %v1391 = vunpack.c.l.b16 %v1320
  %v1392 = vunpack.c.l.b16 %v1321
  %v1393 = vunpack.c.l.b16 %v1322
  %v1394 = vunpack.c.l.b16 %v1323
  %v1395 = vunpack.c.l.b16 %v1324
  %v1396 = vunpack.c.l.b16 %v1325
  %v1397 = vunpack.c.l.b16 %v1326
  %v1398 = vunpack.c.l.b16 %v1327
  %v1399 = vunpack.c.l.b16 %v1328
  %v1400 = vunpack.c.l.b16 %v1329
  %v1401 = vunpack.c.l.b16 %v1330
  %v1402 = vunpack.c.l.b16 %v1331
  %v1403 = vunpack.c.l.b16 %v1332
  %v1404 = vunpack.c.l.b16 %v1333
  %v1405 = vunpack.c.l.b16 %v1334
  %v1406 = vpack.c.b16 %v1375, %v1374
  %v1407 = vpack.c.b16 %v1377, %v1376
  %v1408 = vpack.c.b16 %v1379, %v1378
  %v1409 = vpack.c.b16 %v1381, %v1380
  %v1410 = vpack.c.b16 %v1383, %v1382
  %v1411 = vpack.c.b16 %v1385, %v1384
  %v1412 = vpack.c.b16 %v1387, %v1386
  %v1413 = vpack.c.b16 %v1389, %v1388
  %v1414 = vpack.c.b16 %v1391, %v1390
  %v1415 = vpack.c.b16 %v1393, %v1392
  %v1416 = vpack.c.b16 %v1395, %v1394
  %v1417 = vpack.c.b16 %v1397, %v1396
  %v1418 = vpack.c.b16 %v1399, %v1398
  %v1419 = vpack.c.b16 %v1401, %v1400
  %v1420 = vpack.c.b16 %v1403, %v1402
  %v1421 = vpack.c.b16 %v1405, %v1404
  %1438 = vmatprep.subr.bf16.mxu0 0
  %1439 = vmatpush1.bf16.msra.mxu0 %v1406
  %1440 = vmatprep.subr.bf16.mxu0 0
  %1441 = vmatpush1.bf16.msra.mxu0 %v1407
  %1442 = vmatprep.subr.bf16.mxu0 0
  %1443 = vmatpush1.bf16.msra.mxu0 %v1408
  %1444 = vmatprep.subr.bf16.mxu0 0
  %1445 = vmatpush1.bf16.msra.mxu0 %v1409
  %1446 = vmatprep.subr.bf16.mxu0 0
  %1447 = vmatpush1.bf16.msra.mxu0 %v1410
  %1448 = vmatprep.subr.bf16.mxu0 0
  %1449 = vmatpush1.bf16.msra.mxu0 %v1411
  %1450 = vmatprep.subr.bf16.mxu0 0
  %1451 = vmatpush1.bf16.msra.mxu0 %v1412
  %1452 = vmatprep.subr.bf16.mxu0 0
  %1453 = vmatpush1.bf16.msra.mxu0 %v1413
  %1454 = vmatprep.subr.bf16.mxu0 0
  %1455 = vmatpush1.bf16.msra.mxu0 %v1414
  %1456 = vmatprep.subr.bf16.mxu0 0
  %1457 = vmatpush1.bf16.msra.mxu0 %v1415
  %1458 = vmatprep.subr.bf16.mxu0 0
  %1459 = vmatpush1.bf16.msra.mxu0 %v1416
  %1460 = vmatprep.subr.bf16.mxu0 0
  %1461 = vmatpush1.bf16.msra.mxu0 %v1417
  %1462 = vmatprep.subr.bf16.mxu0 0
  %1463 = vmatpush1.bf16.msra.mxu0 %v1418
  %1464 = vmatprep.subr.bf16.mxu0 0
  %1465 = vmatpush1.bf16.msra.mxu0 %v1419
  %1466 = vmatprep.subr.bf16.mxu0 0
  %1467 = vmatpush1.bf16.msra.mxu0 %v1420
  %1468 = vmatprep.subr.bf16.mxu0 0
  %1469 = vmatpush1.bf16.msra.mxu0 %v1421
  %1470 = vmatprep.mubr.bf16.mxu0 %v1288
  %1471 = vmatmul.mubr.bf16.gmra.mrb[0].mxu0 %v1287
  %v1472 = vpop.f32.mrb[0].mxu0
  %v1473 = vadd.f32 %v1340, %v1472
  %v1474 = vpop.f32.mrb[0].mxu0
  %v1475 = vpop.f32.mrb[0].mxu0
  %v1476 = vadd.f32 %v1340, %v1475
  %v1477 = vpop.f32.mrb[0].mxu0
  %1478 = vmatprep.mubr.bf16.mxu0 %v1290
  %1479 = vmatmul.mubr.bf16.gmra.mrb[0].mxu0 %v1289
  %v1480 = vpop.f32.mrb[0].mxu0
  %v1481 = vadd.f32 %v1340, %v1480
  %v1482 = vpop.f32.mrb[0].mxu0
  %v1483 = vpop.f32.mrb[0].mxu0
  %v1484 = vadd.f32 %v1340, %v1483
  %v1485 = vpop.f32.mrb[0].mxu0
  %1486 = vmatprep.mubr.bf16.mxu0 %v1292
  %1487 = vmatmul.mubr.bf16.gmra.mrb[0].mxu0 %v1291
  %v1488 = vpop.f32.mrb[0].mxu0
  %v1489 = vadd.f32 %v1340, %v1488
  %v1490 = vpop.f32.mrb[0].mxu0
  %v1491 = vpop.f32.mrb[0].mxu0
  %v1492 = vadd.f32 %v1340, %v1491
  %v1493 = vpop.f32.mrb[0].mxu0
  %1494 = vmatprep.mubr.bf16.mxu0 %v1294
  %1495 = vmatmul.mubr.bf16.gmra.mrb[0].mxu0 %v1293
  %v1496 = vpop.f32.mrb[0].mxu0
  %v1497 = vadd.f32 %v1340, %v1496
  %v1498 = vpop.f32.mrb[0].mxu0
  %v1499 = vpop.f32.mrb[0].mxu0
  %v1500 = vadd.f32 %v1340, %v1499
  %v1501 = vpop.f32.mrb[0].mxu0
  %1502 = vmatprep.mubr.bf16.mxu0 %v1296
  %1503 = vmatmul.mubr.bf16.gmra.mrb[0].mxu0 %v1295
  %v1504 = vpop.f32.mrb[0].mxu0
  %v1505 = vadd.f32 %v1340, %v1504
  %v1506 = vpop.f32.mrb[0].mxu0
  %v1507 = vpop.f32.mrb[0].mxu0
  %v1508 = vadd.f32 %v1340, %v1507
  %v1509 = vpop.f32.mrb[0].mxu0
  %1510 = vmatprep.mubr.bf16.mxu0 %v1298
  %1511 = vmatmul.mubr.bf16.gmra.mrb[0].mxu0 %v1297
  %v1512 = vpop.f32.mrb[0].mxu0
  %v1513 = vadd.f32 %v1340, %v1512
  %v1514 = vpop.f32.mrb[0].mxu0
  %v1515 = vpop.f32.mrb[0].mxu0
  %v1516 = vadd.f32 %v1340, %v1515
  %v1517 = vpop.f32.mrb[0].mxu0
  %1518 = vmatprep.mubr.bf16.mxu0 %v1300
  %1519 = vmatmul.mubr.bf16.gmra.mrb[0].mxu0 %v1299
  %v1520 = vpop.f32.mrb[0].mxu0
  %v1521 = vadd.f32 %v1340, %v1520
  %v1522 = vpop.f32.mrb[0].mxu0
  %v1523 = vpop.f32.mrb[0].mxu0
  %v1524 = vadd.f32 %v1340, %v1523
  %v1525 = vpop.f32.mrb[0].mxu0
  %1526 = vmatprep.mubr.bf16.mxu0 %v1302
  %1527 = vmatmul.mubr.bf16.gmra.mrb[0].mxu0 %v1301
  %v1528 = vpop.f32.mrb[0].mxu0
  %v1529 = vadd.f32 %v1340, %v1528
  %v1530 = vpop.f32.mrb[0].mxu0
  %v1531 = vpop.f32.mrb[0].mxu0
  %v1532 = vadd.f32 %v1340, %v1531
  %v1533 = vpop.f32.mrb[0].mxu0
  %1534 = vdwg.mxu0
  %v1535 = vmax.f32 %v1473, 0.0
  %v1536 = vmax.f32 %v1476, 0.0
  %v1537 = vmax.f32 %v1481, 0.0
  %v1538 = vmax.f32 %v1484, 0.0
  %v1539 = vmax.f32 %v1489, 0.0
  %v1540 = vmax.f32 %v1492, 0.0
  %v1541 = vmax.f32 %v1497, 0.0
  %v1542 = vmax.f32 %v1500, 0.0
  %v1543 = vmax.f32 %v1505, 0.0
  %v1544 = vmax.f32 %v1508, 0.0
  %v1545 = vmax.f32 %v1513, 0.0
  %v1546 = vmax.f32 %v1516, 0.0
  %v1547 = vmax.f32 %v1521, 0.0
  %v1548 = vmax.f32 %v1524, 0.0
  %v1549 = vmax.f32 %v1529, 0.0
  %v1550 = vmax.f32 %v1532, 0.0
  %v1551 = vpack.c.bf16 %v1536, %v1535
  %v1552 = vpack.c.bf16 %v1538, %v1537
  %v1553 = vpack.c.bf16 %v1540, %v1539
  %v1554 = vpack.c.bf16 %v1542, %v1541
  %v1555 = vpack.c.bf16 %v1544, %v1543
  %v1556 = vpack.c.bf16 %v1546, %v1545
  %v1557 = vpack.c.bf16 %v1548, %v1547
  %v1558 = vpack.c.bf16 %v1550, %v1549
  %v1559 = vld [vmem:[%s7] sm:$0xf]
  %v1560 = vld [vmem:[%s7 + $0x4] sm:$0xf]
  %v1561 = vld [vmem:[%s7 + $0x8] sm:$0xf]
  %v1562 = vld [vmem:[%s7 + $0xc] sm:$0xf]
  %v1563 = vld [vmem:[%s7 + $0x10] sm:$0xf]
  %v1564 = vld [vmem:[%s7 + $0x14] sm:$0xf]
  %v1565 = vld [vmem:[%s7 + $0x18] sm:$0xf]
  %v1566 = vld [vmem:[%s7 + $0x1c] sm:$0xf]
  %v1567 = vld [vmem:[%s7 + $0x20] sm:$0xf]
  %v1568 = vld [vmem:[%s7 + $0x24] sm:$0xf]
  %v1569 = vld [vmem:[%s7 + $0x28] sm:$0xf]
  %v1570 = vld [vmem:[%s7 + $0x2c] sm:$0xf]
  %v1571 = vld [vmem:[%s7 + $0x30] sm:$0xf]
  %v1572 = vld [vmem:[%s7 + $0x34] sm:$0xf]
  %v1573 = vld [vmem:[%s7 + $0x38] sm:$0xf]
  %v1574 = vld [vmem:[%s7 + $0x3c] sm:$0xf]
  %v1575 = vld [vmem:[%s8] sm:$0x1]
  %v1577 = vlaneseq
  %v1578 = vshrl.u32 %v1577, 7
  %v1579 = vsub.s32 0, %v1578
  %v1580 = vrot.slane %v1575, %v1579
  %v1598 = vunpack.c.l.b16 %v1559
  %v1599 = vunpack.c.l.b16 %v1560
  %v1600 = vunpack.c.l.b16 %v1561
  %v1601 = vunpack.c.l.b16 %v1562
  %v1602 = vunpack.c.l.b16 %v1563
  %v1603 = vunpack.c.l.b16 %v1564
  %v1604 = vunpack.c.l.b16 %v1565
  %v1605 = vunpack.c.l.b16 %v1566
  %v1606 = vunpack.c.l.b16 %v1567
  %v1607 = vunpack.c.l.b16 %v1568
  %v1608 = vunpack.c.l.b16 %v1569
  %v1609 = vunpack.c.l.b16 %v1570
  %v1610 = vunpack.c.l.b16 %v1571
  %v1611 = vunpack.c.l.b16 %v1572
  %v1612 = vunpack.c.l.b16 %v1573
  %v1613 = vunpack.c.l.b16 %v1574
  %v1614 = vpack.c.b16 %v1599, %v1598
  %v1615 = vpack.c.b16 %v1601, %v1600
  %v1616 = vpack.c.b16 %v1603, %v1602
  %v1617 = vpack.c.b16 %v1605, %v1604
  %v1618 = vpack.c.b16 %v1607, %v1606
  %v1619 = vpack.c.b16 %v1609, %v1608
  %v1620 = vpack.c.b16 %v1611, %v1610
  %v1621 = vpack.c.b16 %v1613, %v1612
  %1630 = vmatprep.subr.bf16.mxu0 0
  %1631 = vmatpush1.bf16.msra.mxu0 %v1614
  %1632 = vmatprep.subr.bf16.mxu0 0
  %1633 = vmatpush1.bf16.msra.mxu0 %v1615
  %1634 = vmatprep.subr.bf16.mxu0 0
  %1635 = vmatpush1.bf16.msra.mxu0 %v1616
  %1636 = vmatprep.subr.bf16.mxu0 0
  %1637 = vmatpush1.bf16.msra.mxu0 %v1617
  %1638 = vmatprep.subr.bf16.mxu0 0
  %1639 = vmatpush1.bf16.msra.mxu0 %v1618
  %1640 = vmatprep.subr.bf16.mxu0 0
  %1641 = vmatpush1.bf16.msra.mxu0 %v1619
  %1642 = vmatprep.subr.bf16.mxu0 0
  %1643 = vmatpush1.bf16.msra.mxu0 %v1620
  %1644 = vmatprep.subr.bf16.mxu0 0
  %1645 = vmatpush1.bf16.msra.mxu0 %v1621
  %1646 = vmatprep.subr.bf16.mxu0 0
  %1647 = vmatpush1.bf16.msra.mxu0 0
  %1648 = vmatprep.subr.bf16.mxu0 0
  %1649 = vmatpush1.bf16.msra.mxu0 0
  %1650 = vmatprep.subr.bf16.mxu0 0
  %1651 = vmatpush1.bf16.msra.mxu0 0
  %1652 = vmatprep.subr.bf16.mxu0 0
  %1653 = vmatpush1.bf16.msra.mxu0 0
  %1654 = vmatprep.subr.bf16.mxu0 0
  %1655 = vmatpush1.bf16.msra.mxu0 0
  %1656 = vmatprep.subr.bf16.mxu0 0
  %1657 = vmatpush1.bf16.msra.mxu0 0
  %1658 = vmatprep.subr.bf16.mxu0 0
  %1659 = vmatpush1.bf16.msra.mxu0 0
  %1660 = vmatprep.subr.bf16.mxu0 0
  %1661 = vmatpush1.bf16.msra.mxu0 0
  %1662 = vmatprep.mubr.bf16.mxu0 0
  %1663 = vmatmul.mubr.bf16.gmra.mrb[0].mxu0 %v1551
  %v1664 = vpop.f32.mrb[0].mxu0
  %v1665 = vadd.f32 %v1580, %v1664
  %v1666 = vpop.f32.mrb[0].mxu0
  %v1667 = vpop.f32.mrb[0].mxu0
  %v1668 = vadd.f32 %v1580, %v1667
  %v1669 = vpop.f32.mrb[0].mxu0
  %1670 = vmatprep.mubr.bf16.mxu0 0
  %1671 = vmatmul.mubr.bf16.gmra.mrb[0].mxu0 %v1552
  %v1672 = vpop.f32.mrb[0].mxu0
  %v1673 = vadd.f32 %v1580, %v1672
  %v1674 = vpop.f32.mrb[0].mxu0
  %v1675 = vpop.f32.mrb[0].mxu0
  %v1676 = vadd.f32 %v1580, %v1675
  %v1677 = vpop.f32.mrb[0].mxu0
  %1678 = vmatprep.mubr.bf16.mxu0 0
  %1679 = vmatmul.mubr.bf16.gmra.mrb[0].mxu0 %v1553
  %v1680 = vpop.f32.mrb[0].mxu0
  %v1681 = vadd.f32 %v1580, %v1680
  %v1682 = vpop.f32.mrb[0].mxu0
  %v1683 = vpop.f32.mrb[0].mxu0
  %v1684 = vadd.f32 %v1580, %v1683
  %v1685 = vpop.f32.mrb[0].mxu0
  %1686 = vmatprep.mubr.bf16.mxu0 0
  %1687 = vmatmul.mubr.bf16.gmra.mrb[0].mxu0 %v1554
  %v1688 = vpop.f32.mrb[0].mxu0
  %v1689 = vadd.f32 %v1580, %v1688
  %v1690 = vpop.f32.mrb[0].mxu0
  %v1691 = vpop.f32.mrb[0].mxu0
  %v1692 = vadd.f32 %v1580, %v1691
  %v1693 = vpop.f32.mrb[0].mxu0
  %1694 = vmatprep.mubr.bf16.mxu0 0
  %1695 = vmatmul.mubr.bf16.gmra.mrb[0].mxu0 %v1555
  %v1696 = vpop.f32.mrb[0].mxu0
  %v1697 = vadd.f32 %v1580, %v1696
  %v1698 = vpop.f32.mrb[0].mxu0
  %v1699 = vpop.f32.mrb[0].mxu0
  %v1700 = vadd.f32 %v1580, %v1699
  %v1701 = vpop.f32.mrb[0].mxu0
  %1702 = vmatprep.mubr.bf16.mxu0 0
  %1703 = vmatmul.mubr.bf16.gmra.mrb[0].mxu0 %v1556
  %v1704 = vpop.f32.mrb[0].mxu0
  %v1705 = vadd.f32 %v1580, %v1704
  %v1706 = vpop.f32.mrb[0].mxu0
  %v1707 = vpop.f32.mrb[0].mxu0
  %v1708 = vadd.f32 %v1580, %v1707
  %v1709 = vpop.f32.mrb[0].mxu0
  %1710 = vmatprep.mubr.bf16.mxu0 0
  %1711 = vmatmul.mubr.bf16.gmra.mrb[0].mxu0 %v1557
  %v1712 = vpop.f32.mrb[0].mxu0
  %v1713 = vadd.f32 %v1580, %v1712
  %v1714 = vpop.f32.mrb[0].mxu0
  %v1715 = vpop.f32.mrb[0].mxu0
  %v1716 = vadd.f32 %v1580, %v1715
  %v1717 = vpop.f32.mrb[0].mxu0
  %1718 = vmatprep.mubr.bf16.mxu0 0
  %1719 = vmatmul.mubr.bf16.gmra.mrb[0].mxu0 %v1558
  %v1720 = vpop.f32.mrb[0].mxu0
  %v1721 = vadd.f32 %v1580, %v1720
  %v1722 = vpop.f32.mrb[0].mxu0
  %v1723 = vpop.f32.mrb[0].mxu0
  %v1724 = vadd.f32 %v1580, %v1723
  %v1725 = vpop.f32.mrb[0].mxu0
  %1726 = vdwg.mxu0
  %v1727 = vtanh.pop %v1665
  %v1728 = vtanh.pop %v1668
  %v1729 = vtanh.pop %v1673
  %v1730 = vtanh.pop %v1676
  %v1731 = vtanh.pop %v1681
  %v1732 = vtanh.pop %v1684
  %v1733 = vtanh.pop %v1689
  %v1734 = vtanh.pop %v1692
  %v1735 = vtanh.pop %v1697
  %v1736 = vtanh.pop %v1700
  %v1737 = vtanh.pop %v1705
  %v1738 = vtanh.pop %v1708
  %v1739 = vtanh.pop %v1713
  %v1740 = vtanh.pop %v1716
  %v1741 = vtanh.pop %v1721
  %v1742 = vtanh.pop %v1724
  %1743 = vst [vmem:[%s9] sm:$0xff] %v1727
  %1744 = vst [vmem:[%s9 + $0x8] sm:$0xff] %v1728
  %1745 = vst [vmem:[%s9 + $0x10] sm:$0xff] %v1729
  %1746 = vst [vmem:[%s9 + $0x18] sm:$0xff] %v1730
  %1747 = vst [vmem:[%s9 + $0x20] sm:$0xff] %v1731
  %1748 = vst [vmem:[%s9 + $0x28] sm:$0xff] %v1732
  %1749 = vst [vmem:[%s9 + $0x30] sm:$0xff] %v1733
  %1750 = vst [vmem:[%s9 + $0x38] sm:$0xff] %v1734
  %1751 = vst [vmem:[%s9 + $0x40] sm:$0xff] %v1735
  %1752 = vst [vmem:[%s9 + $0x48] sm:$0xff] %v1736
  %1753 = vst [vmem:[%s9 + $0x50] sm:$0xff] %v1737
  %1754 = vst [vmem:[%s9 + $0x58] sm:$0xff] %v1738
  %1755 = vst [vmem:[%s9 + $0x60] sm:$0xff] %v1739
  %1756 = vst [vmem:[%s9 + $0x68] sm:$0xff] %v1740
  %1757 = vst [vmem:[%s9 + $0x70] sm:$0xff] %v1741
  %1758 = vst [vmem:[%s9 + $0x78] sm:$0xff] %v1742
  // Predicated region
  $region38: #{generator_forward.1} parent=0 // pred_check
    _
  $region39: #{generator_forward.1} parent=0 // pred_check_branch
    %1760 = sbr.rel (0) target = $region41
  $region40: #{generator_forward.1} parent=0 // pred_region
    _
  $region41: #{generator_forward.1} parent=0 // pred_fallthru
    _
  // Predicated region
  $region42: #{generator_forward.1} parent=0 // pred_check
    _
  $region43: #{generator_forward.1} parent=0 // pred_check_branch
    %1762 = sbr.rel (0) target = $region45
  $region44: #{generator_forward.1} parent=0 // pred_region
    _
  $region45: #{generator_forward.1} parent=0 // pred_fallthru
    _

</llo_original>
